<compile_context>
chip_gen: v7x
topology: tpu7x:2x2x1
jax: 0.10.0
libtpu: 0.0.40
codegen_flags: <defaults>
</compile_context>

<pallas_src>
import jax
import jax.numpy as jnp
from jax import lax
from jax.experimental import pallas as pl
from jax.experimental.pallas import tpu as pltpu


def _self_attn_kernel(gamma_ref, x_ref, wq_ref, bq_ref, wk_ref, bk_ref,
                      wv_ref, bv_ref, xres_ref, out_ref, attn_ref):
    # gamma_ref: (1,) SMEM scalar
    # x_ref:     (1, N, Din)   flattened image patches for one batch element
    # w*_ref:    (Din, K/Dv)   pre-transposed linear weights
    # b*_ref:    (1, K/Dv)     biases
    # xres_ref:  (1, N, 1)     residual input X (flattened spatial)
    # out_ref:   (1, N, 1)     logsigmoid(gamma*max(attn@v, -1) + X)
    # attn_ref:  (1, N, N)     softmax attention map (lane-dense)
    x = x_ref[0]                                                     # (N, Din)

    q = jnp.dot(x, wq_ref[...], preferred_element_type=jnp.float32) + bq_ref[...]
    k = jnp.dot(x, wk_ref[...], preferred_element_type=jnp.float32) + bk_ref[...]
    v = jnp.dot(x, wv_ref[...], preferred_element_type=jnp.float32) + bv_ref[...]

    # energy = q @ k^T  (contract the k_dim axis of both operands)
    energy = lax.dot_general(q, k, (((1,), (1,)), ((), ())),
                             preferred_element_type=jnp.float32)     # (N, N)

    # numerically stable softmax over the last (lane) axis
    m = jnp.max(energy, axis=-1, keepdims=True)
    p = jnp.exp(energy - m)
    attn = p / jnp.sum(p, axis=-1, keepdims=True)                    # (N, N)
    attn_ref[...] = attn[None].astype(attn_ref.dtype)

    o = jnp.dot(attn, v, preferred_element_type=jnp.float32)         # (N, Dv)
    row_max = jnp.max(o, axis=-1, keepdims=True)                     # (N, 1)

    z = gamma_ref[0] * row_max + xres_ref[0]                         # (N, 1)
    # stable log-sigmoid: min(z,0) - log(1 + exp(-|z|))
    res = jnp.minimum(z, 0.0) - jnp.log(1.0 + jnp.exp(-jnp.abs(z)))
    out_ref[...] = res[None].astype(out_ref.dtype)


def self_attn_forward(x, X, wq, bq, wk, bk, wv, bv, gamma):
    """Mirror of Self_Attn.forward. x: (B, W, H, in_dim), X broadcastable to
    (B, 1, W, H). Returns (out (B,1,W,H), attn (B, N, N)) with N = W*H."""
    B, W, H, Din = x.shape
    N = W * H
    Kd = wq.shape[0]
    Dv = wv.shape[0]
    # torch.bmm(attn, proj_value) only type-checks when the .view() keeps the
    # same row count, i.e. in_dim == v_dim (the module default usage).
    assert Dv == Din, "Self_Attn requires v_dim == in_dim for the bmm to be valid"

    # --- layout plumbing (tiny, no big HBM intermediates) ---
    x_flat = x.reshape(B, N, Din).astype(jnp.float32)
    xres = jnp.broadcast_to(X, (B, 1, W, H)).reshape(B, N, 1).astype(jnp.float32)
    wq_t = wq.T.astype(jnp.float32)                       # (Din, Kd)
    wk_t = wk.T.astype(jnp.float32)                       # (Din, Kd)
    wv_t = wv.T.astype(jnp.float32)                       # (Din, Dv)
    bq2 = bq.reshape(1, Kd).astype(jnp.float32)
    bk2 = bk.reshape(1, Kd).astype(jnp.float32)
    bv2 = bv.reshape(1, Dv).astype(jnp.float32)
    gamma1 = jnp.asarray(gamma, jnp.float32).reshape(1)

    out, attn = pl.pallas_call(
        _self_attn_kernel,
        out_shape=(jax.ShapeDtypeStruct((B, N, 1), jnp.float32),
                   jax.ShapeDtypeStruct((B, N, N), jnp.float32)),
        grid=(B,),
        in_specs=[
            pl.BlockSpec(memory_space=pltpu.MemorySpace.SMEM),   # gamma (scalar)
            pl.BlockSpec((1, N, Din), lambda b: (b, 0, 0)),      # x
            pl.BlockSpec((Din, Kd), lambda b: (0, 0)),           # Wq^T
            pl.BlockSpec((1, Kd), lambda b: (0, 0)),             # bq
            pl.BlockSpec((Din, Kd), lambda b: (0, 0)),           # Wk^T
            pl.BlockSpec((1, Kd), lambda b: (0, 0)),             # bk
            pl.BlockSpec((Din, Dv), lambda b: (0, 0)),           # Wv^T
            pl.BlockSpec((1, Dv), lambda b: (0, 0)),             # bv
            pl.BlockSpec((1, N, 1), lambda b: (b, 0, 0)),        # X residual
        ],
        out_specs=(pl.BlockSpec((1, N, 1), lambda b: (b, 0, 0)),
                   pl.BlockSpec((1, N, N), lambda b: (b, 0, 0))),
        compiler_params=pltpu.CompilerParams(
            dimension_semantics=("parallel",)),
    )(gamma1, x_flat, wq_t, bq2, wk_t, bk2, wv_t, bv2, xres)

    out = out.reshape(B, W, H)[:, None]                   # (B, 1, W, H)
    return out, attn


class SelfAttnPallas:
    """Pallas mirror of the PyTorch Self_Attn module forward."""

    def __init__(self, in_dim, activation=None, k_dim=64, v_dim=64, a_dim=64,
                 key=None):
        assert v_dim == in_dim, "forward only well-defined when v_dim == in_dim"
        if key is None:
            key = jax.random.PRNGKey(0)
        ks = jax.random.split(key, 6)
        s = 1.0 / (in_dim ** 0.5)
        # deterministic synthetic parameters (no checkpoint load)
        self.wq = jax.random.uniform(ks[0], (k_dim, in_dim), jnp.float32, -s, s)
        self.bq = jax.random.uniform(ks[1], (k_dim,), jnp.float32, -s, s)
        self.wk = jax.random.uniform(ks[2], (k_dim, in_dim), jnp.float32, -s, s)
        self.bk = jax.random.uniform(ks[3], (k_dim,), jnp.float32, -s, s)
        self.wv = jax.random.uniform(ks[4], (in_dim, in_dim), jnp.float32, -s, s)
        self.bv = jax.random.uniform(ks[5], (in_dim,), jnp.float32, -s, s)
        self.gamma = jnp.zeros((1,), jnp.float32)   # nn.Parameter(torch.zeros(1))
        self.in_dim, self.k_dim, self.v_dim, self.a_dim = in_dim, k_dim, v_dim, a_dim

    def __call__(self, x, X):
        return self_attn_forward(x, X, self.wq, self.bq, self.wk, self.bk,
                                 self.wv, self.bv, self.gamma)


def _reference(x, X, wq, bq, wk, bk, wv, bv, gamma):
    """Pure-JAX reference of Self_Attn.forward for validation."""
    B, W, H, Din = x.shape
    N = W * H
    xf = x.reshape(B, N, Din)
    q = jnp.einsum("bnd,kd->bnk", xf, wq, precision=lax.Precision.HIGHEST) + bq
    k = jnp.einsum("bnd,kd->bnk", xf, wk, precision=lax.Precision.HIGHEST) + bk
    v = jnp.einsum("bnd,kd->bnk", xf, wv, precision=lax.Precision.HIGHEST) + bv
    energy = jnp.einsum("bnk,bmk->bnm", q, k, precision=lax.Precision.HIGHEST)
    attn = jax.nn.softmax(energy, axis=-1)
    o = jnp.einsum("bnm,bmd->bnd", attn, v, precision=lax.Precision.HIGHEST)
    omax = jnp.max(o.reshape(B, W, H, -1), axis=-1)[:, None]        # (B,1,W,H)
    out = jax.nn.log_sigmoid(gamma.reshape(()) * omax + X)
    return out, attn


if __name__ == "__main__":
    key = jax.random.PRNGKey(0)
    kx, kX, kp = jax.random.split(key, 3)

    B, W, H, IN_DIM, K_DIM = 2, 16, 16, 32, 32
    N = W * H

    block = SelfAttnPallas(in_dim=IN_DIM, activation="relu",
                           k_dim=K_DIM, v_dim=IN_DIM, a_dim=K_DIM, key=kp)
    # PyTorch initializes gamma to 0; set it nonzero here so the attention
    # branch actually contributes to `out` in the numerical check.
    block.gamma = jnp.asarray([0.5], jnp.float32)

    x = jax.random.normal(kx, (B, W, H, IN_DIM), jnp.float32)
    X = jax.random.normal(kX, (B, 1, W, H), jnp.float32)

    out, attn = block(x, X)
    jax.block_until_ready((out, attn))
    assert out.shape == (B, 1, W, H)
    assert attn.shape == (B, N, N)

    ref_out, ref_attn = _reference(x, X, block.wq, block.bq, block.wk, block.bk,
                                   block.wv, block.bv, block.gamma)
    assert jnp.allclose(attn, ref_attn, atol=1e-3, rtol=1e-3)
    assert jnp.allclose(out, ref_out, atol=1e-3, rtol=1e-3)
    # attention rows sum to 1
    assert jnp.allclose(jnp.sum(attn, axis=-1), 1.0, atol=1e-4)

    print("KERNEL_OK")
</pallas_src>

<mosaic_0001>
module attributes {stable_mosaic.version = 11 : i64} {
  func.func @_self_attn_kernel(%arg0: i32, %arg1: memref<1xf32, #tpu.memory_space<smem>>, %arg2: memref<1x256x32xf32, #tpu.memory_space<vmem>>, %arg3: memref<32x32xf32, #tpu.memory_space<vmem>>, %arg4: memref<1x32xf32, #tpu.memory_space<vmem>>, %arg5: memref<32x32xf32, #tpu.memory_space<vmem>>, %arg6: memref<1x32xf32, #tpu.memory_space<vmem>>, %arg7: memref<32x32xf32, #tpu.memory_space<vmem>>, %arg8: memref<1x32xf32, #tpu.memory_space<vmem>>, %arg9: memref<1x256x1xf32, #tpu.memory_space<vmem>>, %arg10: memref<1x256x1xf32, #tpu.memory_space<vmem>>, %arg11: memref<1x256x256xf32, #tpu.memory_space<vmem>>) attributes {dimension_semantics = [#tpu.dimension_semantics<parallel>], iteration_bounds = array<i64: 2>, scalar_prefetch = 0 : i64, scratch_operands = 0 : i64, tpu.core_type = #tpu.core_type<tc>, window_params = [{transform_indices = @transform_0, window_bounds = array<i64: 1>}, {transform_indices = @transform_1, window_bounds = array<i64: 1, 256, 32>}, {pipeline_mode = #tpu.pipeline_mode<synchronous>, transform_indices = @transform_2, window_bounds = array<i64: 32, 32>}, {pipeline_mode = #tpu.pipeline_mode<synchronous>, transform_indices = @transform_3, window_bounds = array<i64: 1, 32>}, {pipeline_mode = #tpu.pipeline_mode<synchronous>, transform_indices = @transform_4, window_bounds = array<i64: 32, 32>}, {pipeline_mode = #tpu.pipeline_mode<synchronous>, transform_indices = @transform_5, window_bounds = array<i64: 1, 32>}, {pipeline_mode = #tpu.pipeline_mode<synchronous>, transform_indices = @transform_6, window_bounds = array<i64: 32, 32>}, {pipeline_mode = #tpu.pipeline_mode<synchronous>, transform_indices = @transform_7, window_bounds = array<i64: 1, 32>}, {transform_indices = @transform_8, window_bounds = array<i64: 1, 256, 1>}, {transform_indices = @transform_9, window_bounds = array<i64: 1, 256, 1>}, {transform_indices = @transform_10, window_bounds = array<i64: 1, 256, 256>}]} {
    %c0 = arith.constant 0 : index
    %c0_0 = arith.constant 0 : index
    %c0_1 = arith.constant 0 : index
    %0 = vector.load %arg2[%c0, %c0_0, %c0_1] : memref<1x256x32xf32, #tpu.memory_space<vmem>>, vector<1x256x32xf32>
    %1 = vector.shape_cast %0 : vector<1x256x32xf32> to vector<256x32xf32>
    %c0_2 = arith.constant 0 : index
    %c0_3 = arith.constant 0 : index
    %2 = vector.load %arg3[%c0_2, %c0_3] : memref<32x32xf32, #tpu.memory_space<vmem>>, vector<32x32xf32>
    %cst = arith.constant dense<0.000000e+00> : vector<256x32xf32>
    %3 = tpu.matmul %1, %2, %cst {dimension_numbers = #tpu.dot_dimension_numbers<[1], [0], [0], [1], [0, 0, 1, 1], [], []>} : vector<256x32xf32>, vector<32x32xf32>, vector<256x32xf32> -> vector<256x32xf32>
    %c0_4 = arith.constant 0 : index
    %c0_5 = arith.constant 0 : index
    %4 = vector.load %arg4[%c0_4, %c0_5] : memref<1x32xf32, #tpu.memory_space<vmem>>, vector<1x32xf32>
    %5 = vector.broadcast %4 : vector<1x32xf32> to vector<256x32xf32>
    %6 = arith.addf %3, %5 : vector<256x32xf32>
    %c0_6 = arith.constant 0 : index
    %c0_7 = arith.constant 0 : index
    %7 = vector.load %arg5[%c0_6, %c0_7] : memref<32x32xf32, #tpu.memory_space<vmem>>, vector<32x32xf32>
    %cst_8 = arith.constant dense<0.000000e+00> : vector<256x32xf32>
    %8 = tpu.matmul %1, %7, %cst_8 {dimension_numbers = #tpu.dot_dimension_numbers<[1], [0], [0], [1], [0, 0, 1, 1], [], []>} : vector<256x32xf32>, vector<32x32xf32>, vector<256x32xf32> -> vector<256x32xf32>
    %c0_9 = arith.constant 0 : index
    %c0_10 = arith.constant 0 : index
    %9 = vector.load %arg6[%c0_9, %c0_10] : memref<1x32xf32, #tpu.memory_space<vmem>>, vector<1x32xf32>
    %10 = vector.broadcast %9 : vector<1x32xf32> to vector<256x32xf32>
    %11 = arith.addf %8, %10 : vector<256x32xf32>
    %c0_11 = arith.constant 0 : index
    %c0_12 = arith.constant 0 : index
    %12 = vector.load %arg7[%c0_11, %c0_12] : memref<32x32xf32, #tpu.memory_space<vmem>>, vector<32x32xf32>
    %cst_13 = arith.constant dense<0.000000e+00> : vector<256x32xf32>
    %13 = tpu.matmul %1, %12, %cst_13 {dimension_numbers = #tpu.dot_dimension_numbers<[1], [0], [0], [1], [0, 0, 1, 1], [], []>} : vector<256x32xf32>, vector<32x32xf32>, vector<256x32xf32> -> vector<256x32xf32>
    %c0_14 = arith.constant 0 : index
    %c0_15 = arith.constant 0 : index
    %14 = vector.load %arg8[%c0_14, %c0_15] : memref<1x32xf32, #tpu.memory_space<vmem>>, vector<1x32xf32>
    %15 = vector.broadcast %14 : vector<1x32xf32> to vector<256x32xf32>
    %16 = arith.addf %13, %15 : vector<256x32xf32>
    %cst_16 = arith.constant dense<0.000000e+00> : vector<256x256xf32>
    %17 = tpu.matmul %6, %11, %cst_16 {dimension_numbers = #tpu.dot_dimension_numbers<[1], [1], [0], [0], [0, 0, 1, 0], [], []>} : vector<256x32xf32>, vector<256x32xf32>, vector<256x256xf32> -> vector<256x256xf32>
    %cst_17 = arith.constant dense<0xFF800000> : vector<256xf32>
    %18 = vector.multi_reduction <maximumf>, %17, %cst_17 [1] : vector<256x256xf32> to vector<256xf32>
    %19 = vector.shape_cast %18 : vector<256xf32> to vector<256x1xf32>
    %20 = vector.broadcast %19 : vector<256x1xf32> to vector<256x256xf32>
    %21 = arith.subf %17, %20 : vector<256x256xf32>
    %22 = math.exp %21 : vector<256x256xf32>
    %cst_18 = arith.constant dense<0.000000e+00> : vector<256xf32>
    %23 = vector.multi_reduction <add>, %22, %cst_18 [1] : vector<256x256xf32> to vector<256xf32>
    %24 = vector.shape_cast %23 : vector<256xf32> to vector<256x1xf32>
    %25 = vector.broadcast %24 : vector<256x1xf32> to vector<256x256xf32>
    %26 = arith.divf %22, %25 : vector<256x256xf32>
    %27 = vector.shape_cast %26 : vector<256x256xf32> to vector<1x256x256xf32>
    %c0_19 = arith.constant 0 : index
    %c0_20 = arith.constant 0 : index
    %c0_21 = arith.constant 0 : index
    %28 = vector.load %arg11[%c0_19, %c0_20, %c0_21] : memref<1x256x256xf32, #tpu.memory_space<vmem>>, vector<1x256x256xf32>
    tpu.vector_store %arg11[%c0_19, %c0_20, %c0_21], %27 {strides = array<i32>} : memref<1x256x256xf32, #tpu.memory_space<vmem>>, vector<1x256x256xf32>,
    %cst_22 = arith.constant dense<0.000000e+00> : vector<256x32xf32>
    %29 = tpu.matmul %26, %16, %cst_22 {dimension_numbers = #tpu.dot_dimension_numbers<[1], [0], [0], [1], [0, 0, 1, 1], [], []>} : vector<256x256xf32>, vector<256x32xf32>, vector<256x32xf32> -> vector<256x32xf32>
    %cst_23 = arith.constant dense<0xFF800000> : vector<256xf32>
    %30 = vector.multi_reduction <maximumf>, %29, %cst_23 [1] : vector<256x32xf32> to vector<256xf32>
    %31 = vector.shape_cast %30 : vector<256xf32> to vector<256x1xf32>
    %c0_24 = arith.constant 0 : index
    %32 = memref.load %arg1[%c0_24] : memref<1xf32, #tpu.memory_space<smem>>
    %33 = vector.broadcast %32 : f32 to vector<256x1xf32>
    %34 = arith.mulf %33, %31 : vector<256x1xf32>
    %c0_25 = arith.constant 0 : index
    %c0_26 = arith.constant 0 : index
    %c0_27 = arith.constant 0 : index
    %35 = vector.load %arg9[%c0_25, %c0_26, %c0_27] : memref<1x256x1xf32, #tpu.memory_space<vmem>>, vector<1x256x1xf32>
    %36 = vector.shape_cast %35 : vector<1x256x1xf32> to vector<256x1xf32>
    %37 = arith.addf %34, %36 : vector<256x1xf32>
    %cst_28 = arith.constant 0.000000e+00 : f32
    %38 = vector.broadcast %cst_28 : f32 to vector<256x1xf32>
    %39 = arith.minimumf %37, %38 : vector<256x1xf32>
    %40 = math.absf %37 : vector<256x1xf32>
    %cst_29 = arith.constant 0.000000e+00 : f32
    %41 = vector.broadcast %cst_29 : f32 to vector<256x1xf32>
    %42 = arith.subf %41, %40 : vector<256x1xf32>
    %43 = math.exp %42 : vector<256x1xf32>
    %cst_30 = arith.constant 1.000000e+00 : f32
    %44 = vector.broadcast %cst_30 : f32 to vector<256x1xf32>
    %45 = arith.addf %44, %43 : vector<256x1xf32>
    %46 = math.log %45 : vector<256x1xf32>
    %47 = arith.subf %39, %46 : vector<256x1xf32>
    %48 = vector.shape_cast %47 : vector<256x1xf32> to vector<1x256x1xf32>
    %c0_31 = arith.constant 0 : index
    %c0_32 = arith.constant 0 : index
    %c0_33 = arith.constant 0 : index
    %49 = vector.load %arg10[%c0_31, %c0_32, %c0_33] : memref<1x256x1xf32, #tpu.memory_space<vmem>>, vector<1x256x1xf32>
    tpu.vector_store %arg10[%c0_31, %c0_32, %c0_33], %48 {strides = array<i32>} : memref<1x256x1xf32, #tpu.memory_space<vmem>>, vector<1x256x1xf32>,
    return
  }
  func.func @transform_0(%arg0: i32) -> i32 {
    %c0_i32 = arith.constant 0 : i32
    %c0_i32_0 = arith.constant 0 : i32
    return %c0_i32 : i32
  }
  func.func @transform_1(%arg0: i32) -> (i32, i32, i32) {
    %c0_i32 = arith.constant 0 : i32
    %c0_i32_0 = arith.constant 0 : i32
    %c0_i32_1 = arith.constant 0 : i32
    return %arg0, %c0_i32, %c0_i32_0 : i32, i32, i32
  }
  func.func @transform_2(%arg0: i32) -> (i32, i32) {
    %c0_i32 = arith.constant 0 : i32
    %c0_i32_0 = arith.constant 0 : i32
    %c0_i32_1 = arith.constant 0 : i32
    return %c0_i32, %c0_i32_0 : i32, i32
  }
  func.func @transform_3(%arg0: i32) -> (i32, i32) {
    %c0_i32 = arith.constant 0 : i32
    %c0_i32_0 = arith.constant 0 : i32
    %c0_i32_1 = arith.constant 0 : i32
    return %c0_i32, %c0_i32_0 : i32, i32
  }
  func.func @transform_4(%arg0: i32) -> (i32, i32) {
    %c0_i32 = arith.constant 0 : i32
    %c0_i32_0 = arith.constant 0 : i32
    %c0_i32_1 = arith.constant 0 : i32
    return %c0_i32, %c0_i32_0 : i32, i32
  }
  func.func @transform_5(%arg0: i32) -> (i32, i32) {
    %c0_i32 = arith.constant 0 : i32
    %c0_i32_0 = arith.constant 0 : i32
    %c0_i32_1 = arith.constant 0 : i32
    return %c0_i32, %c0_i32_0 : i32, i32
  }
  func.func @transform_6(%arg0: i32) -> (i32, i32) {
    %c0_i32 = arith.constant 0 : i32
    %c0_i32_0 = arith.constant 0 : i32
    %c0_i32_1 = arith.constant 0 : i32
    return %c0_i32, %c0_i32_0 : i32, i32
  }
  func.func @transform_7(%arg0: i32) -> (i32, i32) {
    %c0_i32 = arith.constant 0 : i32
    %c0_i32_0 = arith.constant 0 : i32
    %c0_i32_1 = arith.constant 0 : i32
    return %c0_i32, %c0_i32_0 : i32, i32
  }
  func.func @transform_8(%arg0: i32) -> (i32, i32, i32) {
    %c0_i32 = arith.constant 0 : i32
    %c0_i32_0 = arith.constant 0 : i32
    %c0_i32_1 = arith.constant 0 : i32
    return %arg0, %c0_i32, %c0_i32_0 : i32, i32, i32
  }
  func.func @transform_9(%arg0: i32) -> (i32, i32, i32) {
    %c0_i32 = arith.constant 0 : i32
    %c0_i32_0 = arith.constant 0 : i32
    %c0_i32_1 = arith.constant 0 : i32
    return %arg0, %c0_i32, %c0_i32_0 : i32, i32, i32
  }
  func.func @transform_10(%arg0: i32) -> (i32, i32, i32) {
    %c0_i32 = arith.constant 0 : i32
    %c0_i32_0 = arith.constant 0 : i32
    %c0_i32_1 = arith.constant 0 : i32
    return %arg0, %c0_i32, %c0_i32_0 : i32, i32, i32
  }
}

</mosaic_0001>

<llo_original>
// kernel: tpu_custom_call.1
$region0: #{tpu_custom_call.1}
  #allocation0 [shape = 'u32[]', space=smem, size = 0x4, offset = 0x4, fixed_abs, tag = 'smem constant byte address 0x4 - core index']
  #allocation1 [shape = 'u32[144,128]{1,0:T(1,128)}', space=vmem, size = 0x12000, scoped, tag = 'internal scratch']
  #allocation2 [shape = 'f32[1]{0:T(128)S(6)}', space=smem, size = 0x200, scoped, tag = 'scoped memory for tpu_custom_call.1']
  %s0 = inlined_call_operand.<no memory space> [shape: f32[1], index: 0, kind: input, shape index: {}]
  %s1 = inlined_call_operand.vmem [shape: f32[2,256,32], index: 1, kind: input, shape index: {}]
  %s2 = inlined_call_operand.vmem [shape: f32[32,32], index: 2, kind: input, shape index: {}]
  %s3 = inlined_call_operand.vmem [shape: f32[1,32], index: 3, kind: input, shape index: {}]
  %s4 = inlined_call_operand.vmem [shape: f32[32,32], index: 4, kind: input, shape index: {}]
  %s5 = inlined_call_operand.vmem [shape: f32[1,32], index: 5, kind: input, shape index: {}]
  %s6 = inlined_call_operand.vmem [shape: f32[32,32], index: 6, kind: input, shape index: {}]
  %s7 = inlined_call_operand.vmem [shape: f32[1,32], index: 7, kind: input, shape index: {}]
  %s8 = inlined_call_operand.vmem [shape: f32[2,256,1], index: 8, kind: input, shape index: {}]
  %s9 = inlined_call_operand.vmem [shape: f32[2,256,1], index: 9, kind: output, shape index: {0}]
  %s10 = inlined_call_operand.hbm [shape: f32[2,256,256], index: 10, kind: output, shape index: {1}]
  %11 = xla_tuple %s9, %s10
  %s12 = sld [smem:[#allocation0]]
  $region77: #{tpu_custom_call.1} parent=0
    _
  %s14 = ssub.s32 1, %s12
  %s15 = scalar_select 0, %s14, %s12
  %16 = sst [smem:[#allocation2]] %s0
  $region1: #{tpu_custom_call.1} parent=0
    #allocation3 [shape = 'u8[524288]{0}', space=vmem, size = 0x80000, scoped, tag = 'output window, operand 1']
    #allocation4 [shape = 's32[2]{0}', space=sflag, size = 0x8, scoped, tag = 'scoped memory for tpu_custom_call.1']
    %17 = vsyncpa [#allocation4], 0
    %s18 = scalar_lea.sflag [#allocation4], 1
    %19 = vsyncpa %s18, 0
    loop: start=0, step=1, limit=4
    $region2: #{tpu_custom_call.1} parent=1 // loop_pre_header
      _
    $region3: #{tpu_custom_call.1} parent=1 // loop_header
      %s21 = sphi 0, %s25
      %p22 = scmp.ge.s32.totalorder %s21, 4
      %s29 = sphi 0, %s29
      %s31 = sphi 0, %s29
      %s32 = sphi 0, %s31
      %s46 = sphi 0, %s32
      %s52 = sphi 0, %s54
      %s55 = sphi 0, %s52
      %s56 = sphi 0, %s55
      %s72 = sphi 0, %s56
      %s76 = sphi 0, %s76
      %s78 = sphi 0, %s76
      %s79 = sphi 0, %s78
      %s93 = sphi 0, %s79
      %s97 = sphi 0, %s97
      %s99 = sphi 0, %s97
      %s100 = sphi 0, %s99
      %s114 = sphi 0, %s100
      %s118 = sphi 0, %s118
      %s120 = sphi 0, %s118
      %s121 = sphi 0, %s120
      %s135 = sphi 0, %s121
      %s139 = sphi 0, %s139
      %s141 = sphi 0, %s139
      %s142 = sphi 0, %s141
      %s156 = sphi 0, %s142
      %s160 = sphi 0, %s160
      %s162 = sphi 0, %s160
      %s163 = sphi 0, %s162
      %s177 = sphi 0, %s163
      %s181 = sphi 0, %s181
      %s183 = sphi 0, %s181
      %s184 = sphi 0, %s183
      %s198 = sphi 0, %s184
      %s204 = sphi 0, %s206
      %s207 = sphi 0, %s204
      %s208 = sphi 0, %s207
      %s224 = sphi 0, %s208
      %s230 = sphi 0, %s232
      %s233 = sphi 0, %s230
      %s234 = sphi 0, %s233
      %s250 = sphi 0, %s234
      %s256 = sphi 0, %s258
      %s259 = sphi 0, %s256
      %s260 = sphi 0, %s259
      %s276 = sphi 0, %s260
    $region4: #{tpu_custom_call.1} parent=1 // loop_header_branch
      %24 = sbr.rel (%p22) target = $region8
    $region5: #{tpu_custom_call.1} parent=1 // loop_body
      %s26 = ssub.s32 %s21, 1
      %s27 = ssub.s32 %s21, 2
      %s28 = sadd.s32 %s21, 1
      %s30 = sadd.s32 %s29, 1
      %p33 = scmp.eq.s32.totalorder %s21, 1
      %p34 = scmp.ne.s32.totalorder %s29, %s31
      %p35 = scmp.eq.s32.totalorder %s21, 0
      %p36 = por %p34, %p35
      %p37 = scmp.ne.s32.totalorder %s29, %s31
      %p38 = scmp.eq.s32.totalorder %s26, 1
      %p39 = por %p37, %p38
      %p40 = scmp.ne.s32.totalorder %s31, %s32
      %p41 = scmp.eq.s32.totalorder %s26, 0
      %p42 = por %p40, %p41
      %p43 = scmp.ne.s32.totalorder %s31, %s32
      %p44 = scmp.eq.s32.totalorder %s27, 1
      %p45 = por %p43, %p44
      %p47 = scmp.ne.s32.totalorder %s32, %s46
      %p48 = scmp.eq.s32.totalorder %s27, 0
      %p49 = por %p47, %p48
      %s50 = ssub.s32 %s21, %s28
      %p51 = scmp.eq.s32.totalorder %s50, 0
      %s53 = sadd.s32 %s52, 1
      %s54 = scalar_select %p51, %s52, %s53
      %p57 = pneg %p51
      %p58 = scmp.eq.s32.totalorder %s21, 1
      %p59 = por %p57, %p58
      %p60 = scmp.ne.s32.totalorder %s52, %s55
      %p61 = scmp.eq.s32.totalorder %s21, 0
      %p62 = por %p60, %p61
      %p63 = scmp.ne.s32.totalorder %s52, %s55
      %p64 = scmp.eq.s32.totalorder %s26, 1
      %p65 = por %p63, %p64
      %p66 = scmp.ne.s32.totalorder %s55, %s56
      %p67 = scmp.eq.s32.totalorder %s26, 0
      %p68 = por %p66, %p67
      %p69 = scmp.ne.s32.totalorder %s55, %s56
      %p70 = scmp.eq.s32.totalorder %s27, 1
      %p71 = por %p69, %p70
      %p73 = scmp.ne.s32.totalorder %s56, %s72
      %p74 = scmp.eq.s32.totalorder %s27, 0
      %p75 = por %p73, %p74
      %s77 = sadd.s32 %s76, 1
      %p80 = scmp.eq.s32.totalorder %s21, 1
      %p81 = scmp.ne.s32.totalorder %s76, %s78
      %p82 = scmp.eq.s32.totalorder %s21, 0
      %p83 = por %p81, %p82
      %p84 = scmp.ne.s32.totalorder %s76, %s78
      %p85 = scmp.eq.s32.totalorder %s26, 1
      %p86 = por %p84, %p85
      %p87 = scmp.ne.s32.totalorder %s78, %s79
      %p88 = scmp.eq.s32.totalorder %s26, 0
      %p89 = por %p87, %p88
      %p90 = scmp.ne.s32.totalorder %s78, %s79
      %p91 = scmp.eq.s32.totalorder %s27, 1
      %p92 = por %p90, %p91
      %p94 = scmp.ne.s32.totalorder %s79, %s93
      %p95 = scmp.eq.s32.totalorder %s27, 0
      %p96 = por %p94, %p95
      %s98 = sadd.s32 %s97, 1
      %p101 = scmp.eq.s32.totalorder %s21, 1
      %p102 = scmp.ne.s32.totalorder %s97, %s99
      %p103 = scmp.eq.s32.totalorder %s21, 0
      %p104 = por %p102, %p103
      %p105 = scmp.ne.s32.totalorder %s97, %s99
      %p106 = scmp.eq.s32.totalorder %s26, 1
      %p107 = por %p105, %p106
      %p108 = scmp.ne.s32.totalorder %s99, %s100
      %p109 = scmp.eq.s32.totalorder %s26, 0
      %p110 = por %p108, %p109
      %p111 = scmp.ne.s32.totalorder %s99, %s100
      %p112 = scmp.eq.s32.totalorder %s27, 1
      %p113 = por %p111, %p112
      %p115 = scmp.ne.s32.totalorder %s100, %s114
      %p116 = scmp.eq.s32.totalorder %s27, 0
      %p117 = por %p115, %p116
      %s119 = sadd.s32 %s118, 1
      %p122 = scmp.eq.s32.totalorder %s21, 1
      %p123 = scmp.ne.s32.totalorder %s118, %s120
      %p124 = scmp.eq.s32.totalorder %s21, 0
      %p125 = por %p123, %p124
      %p126 = scmp.ne.s32.totalorder %s118, %s120
      %p127 = scmp.eq.s32.totalorder %s26, 1
      %p128 = por %p126, %p127
      %p129 = scmp.ne.s32.totalorder %s120, %s121
      %p130 = scmp.eq.s32.totalorder %s26, 0
      %p131 = por %p129, %p130
      %p132 = scmp.ne.s32.totalorder %s120, %s121
      %p133 = scmp.eq.s32.totalorder %s27, 1
      %p134 = por %p132, %p133
      %p136 = scmp.ne.s32.totalorder %s121, %s135
      %p137 = scmp.eq.s32.totalorder %s27, 0
      %p138 = por %p136, %p137
      %s140 = sadd.s32 %s139, 1
      %p143 = scmp.eq.s32.totalorder %s21, 1
      %p144 = scmp.ne.s32.totalorder %s139, %s141
      %p145 = scmp.eq.s32.totalorder %s21, 0
      %p146 = por %p144, %p145
      %p147 = scmp.ne.s32.totalorder %s139, %s141
      %p148 = scmp.eq.s32.totalorder %s26, 1
      %p149 = por %p147, %p148
      %p150 = scmp.ne.s32.totalorder %s141, %s142
      %p151 = scmp.eq.s32.totalorder %s26, 0
      %p152 = por %p150, %p151
      %p153 = scmp.ne.s32.totalorder %s141, %s142
      %p154 = scmp.eq.s32.totalorder %s27, 1
      %p155 = por %p153, %p154
      %p157 = scmp.ne.s32.totalorder %s142, %s156
      %p158 = scmp.eq.s32.totalorder %s27, 0
      %p159 = por %p157, %p158
      %s161 = sadd.s32 %s160, 1
      %p164 = scmp.eq.s32.totalorder %s21, 1
      %p165 = scmp.ne.s32.totalorder %s160, %s162
      %p166 = scmp.eq.s32.totalorder %s21, 0
      %p167 = por %p165, %p166
      %p168 = scmp.ne.s32.totalorder %s160, %s162
      %p169 = scmp.eq.s32.totalorder %s26, 1
      %p170 = por %p168, %p169
      %p171 = scmp.ne.s32.totalorder %s162, %s163
      %p172 = scmp.eq.s32.totalorder %s26, 0
      %p173 = por %p171, %p172
      %p174 = scmp.ne.s32.totalorder %s162, %s163
      %p175 = scmp.eq.s32.totalorder %s27, 1
      %p176 = por %p174, %p175
      %p178 = scmp.ne.s32.totalorder %s163, %s177
      %p179 = scmp.eq.s32.totalorder %s27, 0
      %p180 = por %p178, %p179
      %s182 = sadd.s32 %s181, 1
      %p185 = scmp.eq.s32.totalorder %s21, 1
      %p186 = scmp.ne.s32.totalorder %s181, %s183
      %p187 = scmp.eq.s32.totalorder %s21, 0
      %p188 = por %p186, %p187
      %p189 = scmp.ne.s32.totalorder %s181, %s183
      %p190 = scmp.eq.s32.totalorder %s26, 1
      %p191 = por %p189, %p190
      %p192 = scmp.ne.s32.totalorder %s183, %s184
      %p193 = scmp.eq.s32.totalorder %s26, 0
      %p194 = por %p192, %p193
      %p195 = scmp.ne.s32.totalorder %s183, %s184
      %p196 = scmp.eq.s32.totalorder %s27, 1
      %p197 = por %p195, %p196
      %p199 = scmp.ne.s32.totalorder %s184, %s198
      %p200 = scmp.eq.s32.totalorder %s27, 0
      %p201 = por %p199, %p200
      %s202 = ssub.s32 %s21, %s28
      %p203 = scmp.eq.s32.totalorder %s202, 0
      %s205 = sadd.s32 %s204, 1
      %s206 = scalar_select %p203, %s204, %s205
      %p209 = pneg %p203
      %p210 = scmp.eq.s32.totalorder %s21, 1
      %p211 = por %p209, %p210
      %p212 = scmp.ne.s32.totalorder %s204, %s207
      %p213 = scmp.eq.s32.totalorder %s21, 0
      %p214 = por %p212, %p213
      %p215 = scmp.ne.s32.totalorder %s204, %s207
      %p216 = scmp.eq.s32.totalorder %s26, 1
      %p217 = por %p215, %p216
      %p218 = scmp.ne.s32.totalorder %s207, %s208
      %p219 = scmp.eq.s32.totalorder %s26, 0
      %p220 = por %p218, %p219
      %p221 = scmp.ne.s32.totalorder %s207, %s208
      %p222 = scmp.eq.s32.totalorder %s27, 1
      %p223 = por %p221, %p222
      %p225 = scmp.ne.s32.totalorder %s208, %s224
      %p226 = scmp.eq.s32.totalorder %s27, 0
      %p227 = por %p225, %p226
      %s228 = ssub.s32 %s21, %s28
      %p229 = scmp.eq.s32.totalorder %s228, 0
      %s231 = sadd.s32 %s230, 1
      %s232 = scalar_select %p229, %s230, %s231
      %p235 = pneg %p229
      %p236 = scmp.eq.s32.totalorder %s21, 1
      %p237 = por %p235, %p236
      %p238 = scmp.ne.s32.totalorder %s230, %s233
      %p239 = scmp.eq.s32.totalorder %s21, 0
      %p240 = por %p238, %p239
      %p241 = scmp.ne.s32.totalorder %s230, %s233
      %p242 = scmp.eq.s32.totalorder %s26, 1
      %p243 = por %p241, %p242
      %p244 = scmp.ne.s32.totalorder %s233, %s234
      %p245 = scmp.eq.s32.totalorder %s26, 0
      %p246 = por %p244, %p245
      %p247 = scmp.ne.s32.totalorder %s233, %s234
      %p248 = scmp.eq.s32.totalorder %s27, 1
      %p249 = por %p247, %p248
      %p251 = scmp.ne.s32.totalorder %s234, %s250
      %p252 = scmp.eq.s32.totalorder %s27, 0
      %p253 = por %p251, %p252
      %s254 = ssub.s32 %s21, %s28
      %p255 = scmp.eq.s32.totalorder %s254, 0
      %s257 = sadd.s32 %s256, 1
      %s258 = scalar_select %p255, %s256, %s257
      %p261 = pneg %p255
      %p262 = scmp.eq.s32.totalorder %s21, 1
      %p263 = por %p261, %p262
      %p264 = scmp.ne.s32.totalorder %s256, %s259
      %p265 = scmp.eq.s32.totalorder %s21, 0
      %p266 = por %p264, %p265
      %p267 = scmp.ne.s32.totalorder %s256, %s259
      %p268 = scmp.eq.s32.totalorder %s26, 1
      %p269 = por %p267, %p268
      %p270 = scmp.ne.s32.totalorder %s259, %s260
      %p271 = scmp.eq.s32.totalorder %s26, 0
      %p272 = por %p270, %p271
      %p273 = scmp.ne.s32.totalorder %s259, %s260
      %p274 = scmp.eq.s32.totalorder %s27, 1
      %p275 = por %p273, %p274
      %p277 = scmp.ne.s32.totalorder %s260, %s276
      %p278 = scmp.eq.s32.totalorder %s27, 0
      %p279 = por %p277, %p278
      %p280 = scmp.le.s32.totalorder 1, %s21
      %p281 = scmp.lt.s32.totalorder %s21, 3
      %p282 = pnand %p280, %p281
      %p283 = pneg %p282
      // Predicated region
      $region9: #{tpu_custom_call.1} parent=5 // pred_check
        _
      $region10: #{tpu_custom_call.1} parent=5 // pred_check_branch
        %285 = sbr.rel (%p282) target = $region12
      $region11: #{tpu_custom_call.1} parent=5 // pred_region
        %s286 = ssub.s32 %s21, 1
        // Predicated region
        $region13: #{tpu_custom_call.1} parent=11 // pred_check
          %p287 = pneg %p42
        $region14: #{tpu_custom_call.1} parent=11 // pred_check_branch
          %289 = sbr.rel (%p287) target = $region16
        $region15: #{tpu_custom_call.1} parent=11 // pred_region
          _
        $region16: #{tpu_custom_call.1} parent=11 // pred_fallthru
          _
        // Predicated region
        $region17: #{tpu_custom_call.1} parent=11 // pred_check
          %p290 = pneg %p89
        $region18: #{tpu_custom_call.1} parent=11 // pred_check_branch
          %292 = sbr.rel (%p290) target = $region20
        $region19: #{tpu_custom_call.1} parent=11 // pred_region
          _
        $region20: #{tpu_custom_call.1} parent=11 // pred_fallthru
          _
        // Predicated region
        $region21: #{tpu_custom_call.1} parent=11 // pred_check
          %p293 = pneg %p110
        $region22: #{tpu_custom_call.1} parent=11 // pred_check_branch
          %295 = sbr.rel (%p293) target = $region24
        $region23: #{tpu_custom_call.1} parent=11 // pred_region
          _
        $region24: #{tpu_custom_call.1} parent=11 // pred_fallthru
          _
        // Predicated region
        $region25: #{tpu_custom_call.1} parent=11 // pred_check
          %p296 = pneg %p131
        $region26: #{tpu_custom_call.1} parent=11 // pred_check_branch
          %298 = sbr.rel (%p296) target = $region28
        $region27: #{tpu_custom_call.1} parent=11 // pred_region
          _
        $region28: #{tpu_custom_call.1} parent=11 // pred_fallthru
          _
        // Predicated region
        $region29: #{tpu_custom_call.1} parent=11 // pred_check
          %p299 = pneg %p152
        $region30: #{tpu_custom_call.1} parent=11 // pred_check_branch
          %301 = sbr.rel (%p299) target = $region32
        $region31: #{tpu_custom_call.1} parent=11 // pred_region
          _
        $region32: #{tpu_custom_call.1} parent=11 // pred_fallthru
          _
        // Predicated region
        $region33: #{tpu_custom_call.1} parent=11 // pred_check
          %p302 = pneg %p173
        $region34: #{tpu_custom_call.1} parent=11 // pred_check_branch
          %304 = sbr.rel (%p302) target = $region36
        $region35: #{tpu_custom_call.1} parent=11 // pred_region
          _
        $region36: #{tpu_custom_call.1} parent=11 // pred_fallthru
          _
        // Predicated region
        $region37: #{tpu_custom_call.1} parent=11 // pred_check
          %p305 = pneg %p194
        $region38: #{tpu_custom_call.1} parent=11 // pred_check_branch
          %307 = sbr.rel (%p305) target = $region40
        $region39: #{tpu_custom_call.1} parent=11 // pred_region
          _
        $region40: #{tpu_custom_call.1} parent=11 // pred_fallthru
          _
      $region12: #{tpu_custom_call.1} parent=5 // pred_fallthru
        _
      %p308 = scmp.lt.s32.totalorder %s21, 2
      // Predicated region
      $region41: #{tpu_custom_call.1} parent=5 // pred_check
        %p309 = pneg %p308
      $region42: #{tpu_custom_call.1} parent=5 // pred_check_branch
        %311 = sbr.rel (%p309) target = $region44
      $region43: #{tpu_custom_call.1} parent=5 // pred_region
        // Predicated region
        $region45: #{tpu_custom_call.1} parent=43 // pred_check
          %p312 = pneg %p62
        $region46: #{tpu_custom_call.1} parent=43 // pred_check_branch
          %314 = sbr.rel (%p312) target = $region48
        $region47: #{tpu_custom_call.1} parent=43 // pred_region
          %p315 = scmp.lt.s32.totalorder %s21, 1
          %s316 = scalar_select %p315, %s21, 1
          %s317 = smul.addr %s316, 32
          %s318 = smul.addr %s317, 8
          %s319 = scalar_lea.vmem %s1, %s318
        $region48: #{tpu_custom_call.1} parent=43 // pred_fallthru
          _
        // Predicated region
        $region49: #{tpu_custom_call.1} parent=43 // pred_check
          %p320 = pneg %p214
        $region50: #{tpu_custom_call.1} parent=43 // pred_check_branch
          %322 = sbr.rel (%p320) target = $region52
        $region51: #{tpu_custom_call.1} parent=43 // pred_region
          %p323 = scmp.lt.s32.totalorder %s21, 1
          %s324 = scalar_select %p323, %s21, 1
          %s325 = smul.addr %s324, 32
          %s326 = smul.addr %s325, 8
          %s327 = scalar_lea.vmem %s8, %s326
        $region52: #{tpu_custom_call.1} parent=43 // pred_fallthru
          _
      $region44: #{tpu_custom_call.1} parent=5 // pred_fallthru
        _
      %p328 = scmp.le.s32.totalorder 1, %s21
      %p329 = scmp.lt.s32.totalorder %s21, 3
      %p330 = pnand %p328, %p329
      %p331 = pneg %p330
      // Predicated region
      $region53: #{tpu_custom_call.1} parent=5 // pred_check
        _
      $region54: #{tpu_custom_call.1} parent=5 // pred_check_branch
        %333 = sbr.rel (%p330) target = $region56
      $region55: #{tpu_custom_call.1} parent=5 // pred_region
        %s334 = ssub.s32 %s21, 1
        %p335 = pneg %p42
        %p336 = pneg %p39
        %p337 = scmp.lt.s32.totalorder %s26, 1
        %s338 = scalar_select %p337, %s26, 1
        %s339 = smul.addr %s338, 32
        %s340 = smul.addr %s339, 8
        %s341 = scalar_lea.vmem %s1, %s340
        %p342 = pneg %p68
        %p343 = pneg %p65
        %p344 = pneg %p89
        %p345 = pneg %p86
        %p346 = pneg %p110
        %p347 = pneg %p107
        %p348 = pneg %p131
        %p349 = pneg %p128
        %p350 = pneg %p152
        %p351 = pneg %p149
        %p352 = pneg %p173
        %p353 = pneg %p170
        %p354 = pneg %p194
        %p355 = pneg %p191
        %p356 = scmp.lt.s32.totalorder %s26, 1
        %s357 = scalar_select %p356, %s26, 1
        %s358 = smul.addr %s357, 32
        %s359 = smul.addr %s358, 8
        %s360 = scalar_lea.vmem %s8, %s359
        %p361 = pneg %p220
        %p362 = pneg %p217
        %p363 = pneg %p246
        %p364 = pneg %p243
        %p365 = scmp.lt.s32.totalorder %s26, 1
        %s366 = scalar_select %p365, %s26, 1
        %s367 = smul.addr %s366, 32
        %s368 = smul.addr %s367, 8
        %s369 = scalar_lea.vmem %s9, %s368
        %p370 = pneg %p272
        %p371 = pneg %p269
        %s372 = sand.u32 %s259, 1
        %s373 = scalar_lea.sflag [#allocation4], %s372
        %s374 = sand.u32 %s259, 1
        %s375 = smul.addr %s374, 512
        %s376 = scalar_lea.vmem [#allocation3], %s375
        %p377 = scmp.lt.s32.totalorder %s26, 1
        %s378 = scalar_select %p377, %s26, 1
        %s379 = smul.addr %s378, 32
        %s380 = smul.addr %s379, 8
        %s381 = scalar_lea.vmem %s1, %s380
        %p382 = scmp.lt.s32.totalorder %s26, 1
        %s383 = scalar_select %p382, %s26, 1
        %s384 = smul.addr %s383, 32
        %s385 = smul.addr %s384, 8
        %s386 = scalar_lea.vmem %s8, %s385
        %p387 = scmp.lt.s32.totalorder %s26, 1
        %s388 = scalar_select %p387, %s26, 1
        %s389 = smul.addr %s388, 32
        %s390 = smul.addr %s389, 8
        %s391 = scalar_lea.vmem %s9, %s390
        %v392 = vld [vmem:[%s381] sm:$0xff]
        %v393 = vld [vmem:[%s381 + $0x8] sm:$0xff]
        %v394 = vld [vmem:[%s381 + $0x10] sm:$0xff]
        %v395 = vld [vmem:[%s381 + $0x18] sm:$0xff]
        %v396 = vld [vmem:[%s381 + $0x20] sm:$0xff]
        %v397 = vld [vmem:[%s381 + $0x28] sm:$0xff]
        %v398 = vld [vmem:[%s381 + $0x30] sm:$0xff]
        %v399 = vld [vmem:[%s381 + $0x38] sm:$0xff]
        %v400 = vld [vmem:[%s381 + $0x40] sm:$0xff]
        %v401 = vld [vmem:[%s381 + $0x48] sm:$0xff]
        %v402 = vld [vmem:[%s381 + $0x50] sm:$0xff]
        %v403 = vld [vmem:[%s381 + $0x58] sm:$0xff]
        %v404 = vld [vmem:[%s381 + $0x60] sm:$0xff]
        %v405 = vld [vmem:[%s381 + $0x68] sm:$0xff]
        %v406 = vld [vmem:[%s381 + $0x70] sm:$0xff]
        %v407 = vld [vmem:[%s381 + $0x78] sm:$0xff]
        %v408 = vld [vmem:[%s381 + $0x80] sm:$0xff]
        %v409 = vld [vmem:[%s381 + $0x88] sm:$0xff]
        %v410 = vld [vmem:[%s381 + $0x90] sm:$0xff]
        %v411 = vld [vmem:[%s381 + $0x98] sm:$0xff]
        %v412 = vld [vmem:[%s381 + $0xa0] sm:$0xff]
        %v413 = vld [vmem:[%s381 + $0xa8] sm:$0xff]
        %v414 = vld [vmem:[%s381 + $0xb0] sm:$0xff]
        %v415 = vld [vmem:[%s381 + $0xb8] sm:$0xff]
        %v416 = vld [vmem:[%s381 + $0xc0] sm:$0xff]
        %v417 = vld [vmem:[%s381 + $0xc8] sm:$0xff]
        %v418 = vld [vmem:[%s381 + $0xd0] sm:$0xff]
        %v419 = vld [vmem:[%s381 + $0xd8] sm:$0xff]
        %v420 = vld [vmem:[%s381 + $0xe0] sm:$0xff]
        %v421 = vld [vmem:[%s381 + $0xe8] sm:$0xff]
        %v422 = vld [vmem:[%s381 + $0xf0] sm:$0xff]
        %v423 = vld [vmem:[%s381 + $0xf8] sm:$0xff]
        %v424 = vld [vmem:[%s2] sm:$0xff]
        %v425 = vld [vmem:[%s2 + $0x8] sm:$0xff]
        %v426 = vld [vmem:[%s2 + $0x10] sm:$0xff]
        %v427 = vld [vmem:[%s2 + $0x18] sm:$0xff]
        %v428 = vld [vmem:[%s3] sm:$0x1]
        %v430 = vlaneseq
        %v431 = vshrl.u32 %v430, 7
        %v432 = vsub.s32 0, %v431
        %v433 = vrot.slane %v428, %v432
        %vm435 = vcmask 261120
        %v437 = vsel %vm435, %v392, 0
        %v440 = vsel %vm435, %v393, 0
        %v443 = vsel %vm435, %v394, 0
        %v446 = vsel %vm435, %v395, 0
        %v449 = vsel %vm435, %v396, 0
        %v452 = vsel %vm435, %v397, 0
        %v455 = vsel %vm435, %v398, 0
        %v458 = vsel %vm435, %v399, 0
        %v461 = vsel %vm435, %v400, 0
        %v464 = vsel %vm435, %v401, 0
        %v467 = vsel %vm435, %v402, 0
        %v470 = vsel %vm435, %v403, 0
        %v473 = vsel %vm435, %v404, 0
        %v476 = vsel %vm435, %v405, 0
        %v479 = vsel %vm435, %v406, 0
        %v482 = vsel %vm435, %v407, 0
        %v485 = vsel %vm435, %v408, 0
        %v488 = vsel %vm435, %v409, 0
        %v491 = vsel %vm435, %v410, 0
        %v494 = vsel %vm435, %v411, 0
        %v497 = vsel %vm435, %v412, 0
        %v500 = vsel %vm435, %v413, 0
        %v503 = vsel %vm435, %v414, 0
        %v506 = vsel %vm435, %v415, 0
        %v509 = vsel %vm435, %v416, 0
        %v512 = vsel %vm435, %v417, 0
        %v515 = vsel %vm435, %v418, 0
        %v518 = vsel %vm435, %v419, 0
        %v521 = vsel %vm435, %v420, 0
        %v524 = vsel %vm435, %v421, 0
        %v527 = vsel %vm435, %v422, 0
        %v530 = vsel %vm435, %v423, 0
        %532 = vmatprep.subr.mxu0 0.0
        %533 = vmatpush1.msra.mxu0 %v424
        %534 = vmatprep.subr.mxu0 0.0
        %535 = vmatpush1.msra.mxu0 %v425
        %536 = vmatprep.subr.mxu0 0.0
        %537 = vmatpush1.msra.mxu0 %v426
        %538 = vmatprep.subr.mxu0 0.0
        %539 = vmatpush1.msra.mxu0 %v427
        %540 = vmatprep.subr.mxu0 0.0
        %541 = vmatpush1.msra.mxu0 0.0
        %542 = vmatprep.subr.mxu0 0.0
        %543 = vmatpush1.msra.mxu0 0.0
        %544 = vmatprep.subr.mxu0 0.0
        %545 = vmatpush1.msra.mxu0 0.0
        %546 = vmatprep.subr.mxu0 0.0
        %547 = vmatpush1.msra.mxu0 0.0
        %548 = vmatprep.subr.mxu0 0.0
        %549 = vmatpush1.msra.mxu0 0.0
        %550 = vmatprep.subr.mxu0 0.0
        %551 = vmatpush1.msra.mxu0 0.0
        %552 = vmatprep.subr.mxu0 0.0
        %553 = vmatpush1.msra.mxu0 0.0
        %554 = vmatprep.subr.mxu0 0.0
        %555 = vmatpush1.msra.mxu0 0.0
        %556 = vmatprep.subr.mxu0 0.0
        %557 = vmatpush1.msra.mxu0 0.0
        %558 = vmatprep.subr.mxu0 0.0
        %559 = vmatpush1.msra.mxu0 0.0
        %560 = vmatprep.subr.mxu0 0.0
        %561 = vmatpush1.msra.mxu0 0.0
        %562 = vmatprep.subr.mxu0 0.0
        %563 = vmatpush1.msra.mxu0 0.0
        %564 = vmatprep.subr.mxu0 0.0
        %565 = vmatpush1.msra.mxu0 0.0
        %566 = vmatprep.subr.mxu0 0.0
        %567 = vmatpush1.msra.mxu0 0.0
        %568 = vmatprep.subr.mxu0 0.0
        %569 = vmatpush1.msra.mxu0 0.0
        %570 = vmatprep.subr.mxu0 0.0
        %571 = vmatpush1.msra.mxu0 0.0
        %572 = vmatprep.subr.mxu0 0.0
        %573 = vmatpush1.msra.mxu0 0.0
        %574 = vmatprep.subr.mxu0 0.0
        %575 = vmatpush1.msra.mxu0 0.0
        %576 = vmatprep.subr.mxu0 0.0
        %577 = vmatpush1.msra.mxu0 0.0
        %578 = vmatprep.subr.mxu0 0.0
        %579 = vmatpush1.msra.mxu0 0.0
        %580 = vmatprep.subr.mxu0 0.0
        %581 = vmatpush1.msra.mxu0 0.0
        %582 = vmatprep.subr.mxu0 0.0
        %583 = vmatpush1.msra.mxu0 0.0
        %584 = vmatprep.subr.mxu0 0.0
        %585 = vmatpush1.msra.mxu0 0.0
        %586 = vmatprep.subr.mxu0 0.0
        %587 = vmatpush1.msra.mxu0 0.0
        %588 = vmatprep.subr.mxu0 0.0
        %589 = vmatpush1.msra.mxu0 0.0
        %590 = vmatprep.subr.mxu0 0.0
        %591 = vmatpush1.msra.mxu0 0.0
        %592 = vmatprep.subr.mxu0 0.0
        %593 = vmatpush1.msra.mxu0 0.0
        %594 = vmatprep.subr.mxu0 0.0
        %595 = vmatpush1.msra.mxu0 0.0
        %596 = vmatprep.mubr.f32.mxu0 0.0
        %597 = vmatmul.mubr.f32.gmra.mrb[0].mxu0 %v437
        %v598 = vpop.f32.mrb[0].mxu0
        %v599 = vadd.f32 %v433, %v598
        %v600 = vpop.f32.mrb[0].mxu0
        %601 = vmatprep.mubr.f32.mxu0 0.0
        %602 = vmatmul.mubr.f32.gmra.mrb[0].mxu0 %v440
        %v603 = vpop.f32.mrb[0].mxu0
        %v604 = vadd.f32 %v433, %v603
        %v605 = vpop.f32.mrb[0].mxu0
        %606 = vmatprep.mubr.f32.mxu0 0.0
        %607 = vmatmul.mubr.f32.gmra.mrb[0].mxu0 %v443
        %v608 = vpop.f32.mrb[0].mxu0
        %v609 = vadd.f32 %v433, %v608
        %v610 = vpop.f32.mrb[0].mxu0
        %611 = vmatprep.mubr.f32.mxu0 0.0
        %612 = vmatmul.mubr.f32.gmra.mrb[0].mxu0 %v446
        %v613 = vpop.f32.mrb[0].mxu0
        %v614 = vadd.f32 %v433, %v613
        %v615 = vpop.f32.mrb[0].mxu0
        %616 = vmatprep.mubr.f32.mxu0 0.0
        %617 = vmatmul.mubr.f32.gmra.mrb[0].mxu0 %v449
        %v618 = vpop.f32.mrb[0].mxu0
        %v619 = vadd.f32 %v433, %v618
        %v620 = vpop.f32.mrb[0].mxu0
        %621 = vmatprep.mubr.f32.mxu0 0.0
        %622 = vmatmul.mubr.f32.gmra.mrb[0].mxu0 %v452
        %v623 = vpop.f32.mrb[0].mxu0
        %v624 = vadd.f32 %v433, %v623
        %v625 = vpop.f32.mrb[0].mxu0
        %626 = vmatprep.mubr.f32.mxu0 0.0
        %627 = vmatmul.mubr.f32.gmra.mrb[0].mxu0 %v455
        %v628 = vpop.f32.mrb[0].mxu0
        %v629 = vadd.f32 %v433, %v628
        %v630 = vpop.f32.mrb[0].mxu0
        %631 = vmatprep.mubr.f32.mxu0 0.0
        %632 = vmatmul.mubr.f32.gmra.mrb[0].mxu0 %v458
        %v633 = vpop.f32.mrb[0].mxu0
        %v634 = vadd.f32 %v433, %v633
        %v635 = vpop.f32.mrb[0].mxu0
        %636 = vmatprep.mubr.f32.mxu0 0.0
        %637 = vmatmul.mubr.f32.gmra.mrb[0].mxu0 %v461
        %v638 = vpop.f32.mrb[0].mxu0
        %v639 = vadd.f32 %v433, %v638
        %v640 = vpop.f32.mrb[0].mxu0
        %641 = vmatprep.mubr.f32.mxu0 0.0
        %642 = vmatmul.mubr.f32.gmra.mrb[0].mxu0 %v464
        %v643 = vpop.f32.mrb[0].mxu0
        %v644 = vadd.f32 %v433, %v643
        %v645 = vpop.f32.mrb[0].mxu0
        %646 = vmatprep.mubr.f32.mxu0 0.0
        %647 = vmatmul.mubr.f32.gmra.mrb[0].mxu0 %v467
        %v648 = vpop.f32.mrb[0].mxu0
        %v649 = vadd.f32 %v433, %v648
        %v650 = vpop.f32.mrb[0].mxu0
        %651 = vmatprep.mubr.f32.mxu0 0.0
        %652 = vmatmul.mubr.f32.gmra.mrb[0].mxu0 %v470
        %v653 = vpop.f32.mrb[0].mxu0
        %v654 = vadd.f32 %v433, %v653
        %v655 = vpop.f32.mrb[0].mxu0
        %656 = vmatprep.mubr.f32.mxu0 0.0
        %657 = vmatmul.mubr.f32.gmra.mrb[0].mxu0 %v473
        %v658 = vpop.f32.mrb[0].mxu0
        %v659 = vadd.f32 %v433, %v658
        %v660 = vpop.f32.mrb[0].mxu0
        %661 = vmatprep.mubr.f32.mxu0 0.0
        %662 = vmatmul.mubr.f32.gmra.mrb[0].mxu0 %v476
        %v663 = vpop.f32.mrb[0].mxu0
        %v664 = vadd.f32 %v433, %v663
        %v665 = vpop.f32.mrb[0].mxu0
        %666 = vmatprep.mubr.f32.mxu0 0.0
        %667 = vmatmul.mubr.f32.gmra.mrb[0].mxu0 %v479
        %v668 = vpop.f32.mrb[0].mxu0
        %v669 = vadd.f32 %v433, %v668
        %v670 = vpop.f32.mrb[0].mxu0
        %671 = vmatprep.mubr.f32.mxu0 0.0
        %672 = vmatmul.mubr.f32.gmra.mrb[0].mxu0 %v482
        %v673 = vpop.f32.mrb[0].mxu0
        %v674 = vadd.f32 %v433, %v673
        %v675 = vpop.f32.mrb[0].mxu0
        %676 = vmatprep.mubr.f32.mxu0 0.0
        %677 = vmatmul.mubr.f32.gmra.mrb[0].mxu0 %v485
        %v678 = vpop.f32.mrb[0].mxu0
        %v679 = vadd.f32 %v433, %v678
        %v680 = vpop.f32.mrb[0].mxu0
        %681 = vmatprep.mubr.f32.mxu0 0.0
        %682 = vmatmul.mubr.f32.gmra.mrb[0].mxu0 %v488
        %v683 = vpop.f32.mrb[0].mxu0
        %v684 = vadd.f32 %v433, %v683
        %v685 = vpop.f32.mrb[0].mxu0
        %686 = vmatprep.mubr.f32.mxu0 0.0
        %687 = vmatmul.mubr.f32.gmra.mrb[0].mxu0 %v491
        %v688 = vpop.f32.mrb[0].mxu0
        %v689 = vadd.f32 %v433, %v688
        %v690 = vpop.f32.mrb[0].mxu0
        %691 = vmatprep.mubr.f32.mxu0 0.0
        %692 = vmatmul.mubr.f32.gmra.mrb[0].mxu0 %v494
        %v693 = vpop.f32.mrb[0].mxu0
        %v694 = vadd.f32 %v433, %v693
        %v695 = vpop.f32.mrb[0].mxu0
        %696 = vmatprep.mubr.f32.mxu0 0.0
        %697 = vmatmul.mubr.f32.gmra.mrb[0].mxu0 %v497
        %v698 = vpop.f32.mrb[0].mxu0
        %v699 = vadd.f32 %v433, %v698
        %v700 = vpop.f32.mrb[0].mxu0
        %701 = vmatprep.mubr.f32.mxu0 0.0
        %702 = vmatmul.mubr.f32.gmra.mrb[0].mxu0 %v500
        %v703 = vpop.f32.mrb[0].mxu0
        %v704 = vadd.f32 %v433, %v703
        %v705 = vpop.f32.mrb[0].mxu0
        %706 = vmatprep.mubr.f32.mxu0 0.0
        %707 = vmatmul.mubr.f32.gmra.mrb[0].mxu0 %v503
        %v708 = vpop.f32.mrb[0].mxu0
        %v709 = vadd.f32 %v433, %v708
        %v710 = vpop.f32.mrb[0].mxu0
        %711 = vmatprep.mubr.f32.mxu0 0.0
        %712 = vmatmul.mubr.f32.gmra.mrb[0].mxu0 %v506
        %v713 = vpop.f32.mrb[0].mxu0
        %v714 = vadd.f32 %v433, %v713
        %v715 = vpop.f32.mrb[0].mxu0
        %716 = vmatprep.mubr.f32.mxu0 0.0
        %717 = vmatmul.mubr.f32.gmra.mrb[0].mxu0 %v509
        %v718 = vpop.f32.mrb[0].mxu0
        %v719 = vadd.f32 %v433, %v718
        %v720 = vpop.f32.mrb[0].mxu0
        %721 = vmatprep.mubr.f32.mxu0 0.0
        %722 = vmatmul.mubr.f32.gmra.mrb[0].mxu0 %v512
        %v723 = vpop.f32.mrb[0].mxu0
        %v724 = vadd.f32 %v433, %v723
        %v725 = vpop.f32.mrb[0].mxu0
        %726 = vmatprep.mubr.f32.mxu0 0.0
        %727 = vmatmul.mubr.f32.gmra.mrb[0].mxu0 %v515
        %v728 = vpop.f32.mrb[0].mxu0
        %v729 = vadd.f32 %v433, %v728
        %v730 = vpop.f32.mrb[0].mxu0
        %731 = vmatprep.mubr.f32.mxu0 0.0
        %732 = vmatmul.mubr.f32.gmra.mrb[0].mxu0 %v518
        %v733 = vpop.f32.mrb[0].mxu0
        %v734 = vadd.f32 %v433, %v733
        %v735 = vpop.f32.mrb[0].mxu0
        %736 = vmatprep.mubr.f32.mxu0 0.0
        %737 = vmatmul.mubr.f32.gmra.mrb[0].mxu0 %v521
        %v738 = vpop.f32.mrb[0].mxu0
        %v739 = vadd.f32 %v433, %v738
        %v740 = vpop.f32.mrb[0].mxu0
        %741 = vmatprep.mubr.f32.mxu0 0.0
        %742 = vmatmul.mubr.f32.gmra.mrb[0].mxu0 %v524
        %v743 = vpop.f32.mrb[0].mxu0
        %v744 = vadd.f32 %v433, %v743
        %v745 = vpop.f32.mrb[0].mxu0
        %746 = vmatprep.mubr.f32.mxu0 0.0
        %747 = vmatmul.mubr.f32.gmra.mrb[0].mxu0 %v527
        %v748 = vpop.f32.mrb[0].mxu0
        %v749 = vadd.f32 %v433, %v748
        %v750 = vpop.f32.mrb[0].mxu0
        %751 = vmatprep.mubr.f32.mxu0 0.0
        %752 = vmatmul.mubr.f32.gmra.mrb[0].mxu0 %v530
        %v753 = vpop.f32.mrb[0].mxu0
        %v754 = vadd.f32 %v433, %v753
        %v755 = vpop.f32.mrb[0].mxu0
        %756 = vdwg.mxu0
        %v757 = vld [vmem:[%s4] sm:$0xff]
        %v758 = vld [vmem:[%s4 + $0x8] sm:$0xff]
        %v759 = vld [vmem:[%s4 + $0x10] sm:$0xff]
        %v760 = vld [vmem:[%s4 + $0x18] sm:$0xff]
        %v761 = vld [vmem:[%s5] sm:$0x1]
        %v763 = vlaneseq
        %v764 = vshrl.u32 %v763, 7
        %v765 = vsub.s32 0, %v764
        %v766 = vrot.slane %v761, %v765
        %768 = vmatprep.subr.mxu0 0.0
        %769 = vmatpush1.msra.mxu0 %v757
        %770 = vmatprep.subr.mxu0 0.0
        %771 = vmatpush1.msra.mxu0 %v758
        %772 = vmatprep.subr.mxu0 0.0
        %773 = vmatpush1.msra.mxu0 %v759
        %774 = vmatprep.subr.mxu0 0.0
        %775 = vmatpush1.msra.mxu0 %v760
        %776 = vmatprep.subr.mxu0 0.0
        %777 = vmatpush1.msra.mxu0 0.0
        %778 = vmatprep.subr.mxu0 0.0
        %779 = vmatpush1.msra.mxu0 0.0
        %780 = vmatprep.subr.mxu0 0.0
        %781 = vmatpush1.msra.mxu0 0.0
        %782 = vmatprep.subr.mxu0 0.0
        %783 = vmatpush1.msra.mxu0 0.0
        %784 = vmatprep.subr.mxu0 0.0
        %785 = vmatpush1.msra.mxu0 0.0
        %786 = vmatprep.subr.mxu0 0.0
        %787 = vmatpush1.msra.mxu0 0.0
        %788 = vmatprep.subr.mxu0 0.0
        %789 = vmatpush1.msra.mxu0 0.0
        %790 = vmatprep.subr.mxu0 0.0
        %791 = vmatpush1.msra.mxu0 0.0
        %792 = vmatprep.subr.mxu0 0.0
        %793 = vmatpush1.msra.mxu0 0.0
        %794 = vmatprep.subr.mxu0 0.0
        %795 = vmatpush1.msra.mxu0 0.0
        %796 = vmatprep.subr.mxu0 0.0
        %797 = vmatpush1.msra.mxu0 0.0
        %798 = vmatprep.subr.mxu0 0.0
        %799 = vmatpush1.msra.mxu0 0.0
        %800 = vmatprep.subr.mxu0 0.0
        %801 = vmatpush1.msra.mxu0 0.0
        %802 = vmatprep.subr.mxu0 0.0
        %803 = vmatpush1.msra.mxu0 0.0
        %804 = vmatprep.subr.mxu0 0.0
        %805 = vmatpush1.msra.mxu0 0.0
        %806 = vmatprep.subr.mxu0 0.0
        %807 = vmatpush1.msra.mxu0 0.0
        %808 = vmatprep.subr.mxu0 0.0
        %809 = vmatpush1.msra.mxu0 0.0
        %810 = vmatprep.subr.mxu0 0.0
        %811 = vmatpush1.msra.mxu0 0.0
        %812 = vmatprep.subr.mxu0 0.0
        %813 = vmatpush1.msra.mxu0 0.0
        %814 = vmatprep.subr.mxu0 0.0
        %815 = vmatpush1.msra.mxu0 0.0
        %816 = vmatprep.subr.mxu0 0.0
        %817 = vmatpush1.msra.mxu0 0.0
        %818 = vmatprep.subr.mxu0 0.0
        %819 = vmatpush1.msra.mxu0 0.0
        %820 = vmatprep.subr.mxu0 0.0
        %821 = vmatpush1.msra.mxu0 0.0
        %822 = vmatprep.subr.mxu0 0.0
        %823 = vmatpush1.msra.mxu0 0.0
        %824 = vmatprep.subr.mxu0 0.0
        %825 = vmatpush1.msra.mxu0 0.0
        %826 = vmatprep.subr.mxu0 0.0
        %827 = vmatpush1.msra.mxu0 0.0
        %828 = vmatprep.subr.mxu0 0.0
        %829 = vmatpush1.msra.mxu0 0.0
        %830 = vmatprep.subr.mxu0 0.0
        %831 = vmatpush1.msra.mxu0 0.0
        %832 = vmatprep.mubr.f32.mxu0 0.0
        %833 = vmatmul.mubr.f32.gmra.mrb[0].mxu0 %v437
        %v834 = vpop.f32.mrb[0].mxu0
        %v835 = vadd.f32 %v766, %v834
        %v836 = vpop.f32.mrb[0].mxu0
        %837 = vmatprep.mubr.f32.mxu0 0.0
        %838 = vmatmul.mubr.f32.gmra.mrb[0].mxu0 %v440
        %v839 = vpop.f32.mrb[0].mxu0
        %v840 = vadd.f32 %v766, %v839
        %v841 = vpop.f32.mrb[0].mxu0
        %842 = vmatprep.mubr.f32.mxu0 0.0
        %843 = vmatmul.mubr.f32.gmra.mrb[0].mxu0 %v443
        %v844 = vpop.f32.mrb[0].mxu0
        %v845 = vadd.f32 %v766, %v844
        %v846 = vpop.f32.mrb[0].mxu0
        %847 = vmatprep.mubr.f32.mxu0 0.0
        %848 = vmatmul.mubr.f32.gmra.mrb[0].mxu0 %v446
        %v849 = vpop.f32.mrb[0].mxu0
        %v850 = vadd.f32 %v766, %v849
        %v851 = vpop.f32.mrb[0].mxu0
        %852 = vmatprep.mubr.f32.mxu0 0.0
        %853 = vmatmul.mubr.f32.gmra.mrb[0].mxu0 %v449
        %v854 = vpop.f32.mrb[0].mxu0
        %v855 = vadd.f32 %v766, %v854
        %v856 = vpop.f32.mrb[0].mxu0
        %857 = vmatprep.mubr.f32.mxu0 0.0
        %858 = vmatmul.mubr.f32.gmra.mrb[0].mxu0 %v452
        %v859 = vpop.f32.mrb[0].mxu0
        %v860 = vadd.f32 %v766, %v859
        %v861 = vpop.f32.mrb[0].mxu0
        %862 = vmatprep.mubr.f32.mxu0 0.0
        %863 = vmatmul.mubr.f32.gmra.mrb[0].mxu0 %v455
        %v864 = vpop.f32.mrb[0].mxu0
        %v865 = vadd.f32 %v766, %v864
        %v866 = vpop.f32.mrb[0].mxu0
        %867 = vmatprep.mubr.f32.mxu0 0.0
        %868 = vmatmul.mubr.f32.gmra.mrb[0].mxu0 %v458
        %v869 = vpop.f32.mrb[0].mxu0
        %v870 = vadd.f32 %v766, %v869
        %v871 = vpop.f32.mrb[0].mxu0
        %872 = vmatprep.mubr.f32.mxu0 0.0
        %873 = vmatmul.mubr.f32.gmra.mrb[0].mxu0 %v461
        %v874 = vpop.f32.mrb[0].mxu0
        %v875 = vadd.f32 %v766, %v874
        %v876 = vpop.f32.mrb[0].mxu0
        %877 = vmatprep.mubr.f32.mxu0 0.0
        %878 = vmatmul.mubr.f32.gmra.mrb[0].mxu0 %v464
        %v879 = vpop.f32.mrb[0].mxu0
        %v880 = vadd.f32 %v766, %v879
        %v881 = vpop.f32.mrb[0].mxu0
        %882 = vmatprep.mubr.f32.mxu0 0.0
        %883 = vmatmul.mubr.f32.gmra.mrb[0].mxu0 %v467
        %v884 = vpop.f32.mrb[0].mxu0
        %v885 = vadd.f32 %v766, %v884
        %v886 = vpop.f32.mrb[0].mxu0
        %887 = vmatprep.mubr.f32.mxu0 0.0
        %888 = vmatmul.mubr.f32.gmra.mrb[0].mxu0 %v470
        %v889 = vpop.f32.mrb[0].mxu0
        %v890 = vadd.f32 %v766, %v889
        %v891 = vpop.f32.mrb[0].mxu0
        %892 = vmatprep.mubr.f32.mxu0 0.0
        %893 = vmatmul.mubr.f32.gmra.mrb[0].mxu0 %v473
        %v894 = vpop.f32.mrb[0].mxu0
        %v895 = vadd.f32 %v766, %v894
        %v896 = vpop.f32.mrb[0].mxu0
        %897 = vmatprep.mubr.f32.mxu0 0.0
        %898 = vmatmul.mubr.f32.gmra.mrb[0].mxu0 %v476
        %v899 = vpop.f32.mrb[0].mxu0
        %v900 = vadd.f32 %v766, %v899
        %v901 = vpop.f32.mrb[0].mxu0
        %902 = vmatprep.mubr.f32.mxu0 0.0
        %903 = vmatmul.mubr.f32.gmra.mrb[0].mxu0 %v479
        %v904 = vpop.f32.mrb[0].mxu0
        %v905 = vadd.f32 %v766, %v904
        %v906 = vpop.f32.mrb[0].mxu0
        %907 = vmatprep.mubr.f32.mxu0 0.0
        %908 = vmatmul.mubr.f32.gmra.mrb[0].mxu0 %v482
        %v909 = vpop.f32.mrb[0].mxu0
        %v910 = vadd.f32 %v766, %v909
        %v911 = vpop.f32.mrb[0].mxu0
        %912 = vmatprep.mubr.f32.mxu0 0.0
        %913 = vmatmul.mubr.f32.gmra.mrb[0].mxu0 %v485
        %v914 = vpop.f32.mrb[0].mxu0
        %v915 = vadd.f32 %v766, %v914
        %v916 = vpop.f32.mrb[0].mxu0
        %917 = vmatprep.mubr.f32.mxu0 0.0
        %918 = vmatmul.mubr.f32.gmra.mrb[0].mxu0 %v488
        %v919 = vpop.f32.mrb[0].mxu0
        %v920 = vadd.f32 %v766, %v919
        %v921 = vpop.f32.mrb[0].mxu0
        %922 = vmatprep.mubr.f32.mxu0 0.0
        %923 = vmatmul.mubr.f32.gmra.mrb[0].mxu0 %v491
        %v924 = vpop.f32.mrb[0].mxu0
        %v925 = vadd.f32 %v766, %v924
        %v926 = vpop.f32.mrb[0].mxu0
        %927 = vmatprep.mubr.f32.mxu0 0.0
        %928 = vmatmul.mubr.f32.gmra.mrb[0].mxu0 %v494
        %v929 = vpop.f32.mrb[0].mxu0
        %v930 = vadd.f32 %v766, %v929
        %v931 = vpop.f32.mrb[0].mxu0
        %932 = vmatprep.mubr.f32.mxu0 0.0
        %933 = vmatmul.mubr.f32.gmra.mrb[0].mxu0 %v497
        %v934 = vpop.f32.mrb[0].mxu0
        %v935 = vadd.f32 %v766, %v934
        %v936 = vpop.f32.mrb[0].mxu0
        %937 = vmatprep.mubr.f32.mxu0 0.0
        %938 = vmatmul.mubr.f32.gmra.mrb[0].mxu0 %v500
        %v939 = vpop.f32.mrb[0].mxu0
        %v940 = vadd.f32 %v766, %v939
        %v941 = vpop.f32.mrb[0].mxu0
        %942 = vmatprep.mubr.f32.mxu0 0.0
        %943 = vmatmul.mubr.f32.gmra.mrb[0].mxu0 %v503
        %v944 = vpop.f32.mrb[0].mxu0
        %v945 = vadd.f32 %v766, %v944
        %v946 = vpop.f32.mrb[0].mxu0
        %947 = vmatprep.mubr.f32.mxu0 0.0
        %948 = vmatmul.mubr.f32.gmra.mrb[0].mxu0 %v506
        %v949 = vpop.f32.mrb[0].mxu0
        %v950 = vadd.f32 %v766, %v949
        %v951 = vpop.f32.mrb[0].mxu0
        %952 = vmatprep.mubr.f32.mxu0 0.0
        %953 = vmatmul.mubr.f32.gmra.mrb[0].mxu0 %v509
        %v954 = vpop.f32.mrb[0].mxu0
        %v955 = vadd.f32 %v766, %v954
        %v956 = vpop.f32.mrb[0].mxu0
        %957 = vmatprep.mubr.f32.mxu0 0.0
        %958 = vmatmul.mubr.f32.gmra.mrb[0].mxu0 %v512
        %v959 = vpop.f32.mrb[0].mxu0
        %v960 = vadd.f32 %v766, %v959
        %v961 = vpop.f32.mrb[0].mxu0
        %962 = vmatprep.mubr.f32.mxu0 0.0
        %963 = vmatmul.mubr.f32.gmra.mrb[0].mxu0 %v515
        %v964 = vpop.f32.mrb[0].mxu0
        %v965 = vadd.f32 %v766, %v964
        %v966 = vpop.f32.mrb[0].mxu0
        %967 = vmatprep.mubr.f32.mxu0 0.0
        %968 = vmatmul.mubr.f32.gmra.mrb[0].mxu0 %v518
        %v969 = vpop.f32.mrb[0].mxu0
        %v970 = vadd.f32 %v766, %v969
        %v971 = vpop.f32.mrb[0].mxu0
        %972 = vmatprep.mubr.f32.mxu0 0.0
        %973 = vmatmul.mubr.f32.gmra.mrb[0].mxu0 %v521
        %v974 = vpop.f32.mrb[0].mxu0
        %v975 = vadd.f32 %v766, %v974
        %v976 = vpop.f32.mrb[0].mxu0
        %977 = vmatprep.mubr.f32.mxu0 0.0
        %978 = vmatmul.mubr.f32.gmra.mrb[0].mxu0 %v524
        %v979 = vpop.f32.mrb[0].mxu0
        %v980 = vadd.f32 %v766, %v979
        %v981 = vpop.f32.mrb[0].mxu0
        %982 = vmatprep.mubr.f32.mxu0 0.0
        %983 = vmatmul.mubr.f32.gmra.mrb[0].mxu0 %v527
        %v984 = vpop.f32.mrb[0].mxu0
        %v985 = vadd.f32 %v766, %v984
        %v986 = vpop.f32.mrb[0].mxu0
        %987 = vmatprep.mubr.f32.mxu0 0.0
        %988 = vmatmul.mubr.f32.gmra.mrb[0].mxu0 %v530
        %v989 = vpop.f32.mrb[0].mxu0
        %v990 = vadd.f32 %v766, %v989
        %v991 = vpop.f32.mrb[0].mxu0
        %992 = vdwg.mxu0
        %v993 = vld [vmem:[%s6] sm:$0xff]
        %v994 = vld [vmem:[%s6 + $0x8] sm:$0xff]
        %v995 = vld [vmem:[%s6 + $0x10] sm:$0xff]
        %v996 = vld [vmem:[%s6 + $0x18] sm:$0xff]
        %v997 = vld [vmem:[%s7] sm:$0x1]
        %v999 = vlaneseq
        %v1000 = vshrl.u32 %v999, 7
        %v1001 = vsub.s32 0, %v1000
        %v1002 = vrot.slane %v997, %v1001
        %1004 = vmatprep.subr.mxu0 0.0
        %1005 = vmatpush1.msra.mxu0 %v993
        %1006 = vmatprep.subr.mxu0 0.0
        %1007 = vmatpush1.msra.mxu0 %v994
        %1008 = vmatprep.subr.mxu0 0.0
        %1009 = vmatpush1.msra.mxu0 %v995
        %1010 = vmatprep.subr.mxu0 0.0
        %1011 = vmatpush1.msra.mxu0 %v996
        %1012 = vmatprep.subr.mxu0 0.0
        %1013 = vmatpush1.msra.mxu0 0.0
        %1014 = vmatprep.subr.mxu0 0.0
        %1015 = vmatpush1.msra.mxu0 0.0
        %1016 = vmatprep.subr.mxu0 0.0
        %1017 = vmatpush1.msra.mxu0 0.0
        %1018 = vmatprep.subr.mxu0 0.0
        %1019 = vmatpush1.msra.mxu0 0.0
        %1020 = vmatprep.subr.mxu0 0.0
        %1021 = vmatpush1.msra.mxu0 0.0
        %1022 = vmatprep.subr.mxu0 0.0
        %1023 = vmatpush1.msra.mxu0 0.0
        %1024 = vmatprep.subr.mxu0 0.0
        %1025 = vmatpush1.msra.mxu0 0.0
        %1026 = vmatprep.subr.mxu0 0.0
        %1027 = vmatpush1.msra.mxu0 0.0
        %1028 = vmatprep.subr.mxu0 0.0
        %1029 = vmatpush1.msra.mxu0 0.0
        %1030 = vmatprep.subr.mxu0 0.0
        %1031 = vmatpush1.msra.mxu0 0.0
        %1032 = vmatprep.subr.mxu0 0.0
        %1033 = vmatpush1.msra.mxu0 0.0
        %1034 = vmatprep.subr.mxu0 0.0
        %1035 = vmatpush1.msra.mxu0 0.0
        %1036 = vmatprep.subr.mxu0 0.0
        %1037 = vmatpush1.msra.mxu0 0.0
        %1038 = vmatprep.subr.mxu0 0.0
        %1039 = vmatpush1.msra.mxu0 0.0
        %1040 = vmatprep.subr.mxu0 0.0
        %1041 = vmatpush1.msra.mxu0 0.0
        %1042 = vmatprep.subr.mxu0 0.0
        %1043 = vmatpush1.msra.mxu0 0.0
        %1044 = vmatprep.subr.mxu0 0.0
        %1045 = vmatpush1.msra.mxu0 0.0
        %1046 = vmatprep.subr.mxu0 0.0
        %1047 = vmatpush1.msra.mxu0 0.0
        %1048 = vmatprep.subr.mxu0 0.0
        %1049 = vmatpush1.msra.mxu0 0.0
        %1050 = vmatprep.subr.mxu0 0.0
        %1051 = vmatpush1.msra.mxu0 0.0
        %1052 = vmatprep.subr.mxu0 0.0
        %1053 = vmatpush1.msra.mxu0 0.0
        %1054 = vmatprep.subr.mxu0 0.0
        %1055 = vmatpush1.msra.mxu0 0.0
        %1056 = vmatprep.subr.mxu0 0.0
        %1057 = vmatpush1.msra.mxu0 0.0
        %1058 = vmatprep.subr.mxu0 0.0
        %1059 = vmatpush1.msra.mxu0 0.0
        %1060 = vmatprep.subr.mxu0 0.0
        %1061 = vmatpush1.msra.mxu0 0.0
        %1062 = vmatprep.subr.mxu0 0.0
        %1063 = vmatpush1.msra.mxu0 0.0
        %1064 = vmatprep.subr.mxu0 0.0
        %1065 = vmatpush1.msra.mxu0 0.0
        %1066 = vmatprep.subr.mxu0 0.0
        %1067 = vmatpush1.msra.mxu0 0.0
        %1068 = vmatprep.mubr.f32.mxu0 0.0
        %1069 = vmatmul.mubr.f32.gmra.mrb[0].mxu0 %v437
        %v1070 = vpop.f32.mrb[0].mxu0
        %v1071 = vadd.f32 %v1002, %v1070
        %v1072 = vpop.f32.mrb[0].mxu0
        %1073 = vmatprep.mubr.f32.mxu0 0.0
        %1074 = vmatmul.mubr.f32.gmra.mrb[0].mxu0 %v440
        %v1075 = vpop.f32.mrb[0].mxu0
        %v1076 = vadd.f32 %v1002, %v1075
        %v1077 = vpop.f32.mrb[0].mxu0
        %1078 = vmatprep.mubr.f32.mxu0 0.0
        %1079 = vmatmul.mubr.f32.gmra.mrb[0].mxu0 %v443
        %v1080 = vpop.f32.mrb[0].mxu0
        %v1081 = vadd.f32 %v1002, %v1080
        %v1082 = vpop.f32.mrb[0].mxu0
        %1083 = vmatprep.mubr.f32.mxu0 0.0
        %1084 = vmatmul.mubr.f32.gmra.mrb[0].mxu0 %v446
        %v1085 = vpop.f32.mrb[0].mxu0
        %v1086 = vadd.f32 %v1002, %v1085
        %v1087 = vpop.f32.mrb[0].mxu0
        %1088 = vmatprep.mubr.f32.mxu0 0.0
        %1089 = vmatmul.mubr.f32.gmra.mrb[0].mxu0 %v449
        %v1090 = vpop.f32.mrb[0].mxu0
        %v1091 = vadd.f32 %v1002, %v1090
        %v1092 = vpop.f32.mrb[0].mxu0
        %1093 = vmatprep.mubr.f32.mxu0 0.0
        %1094 = vmatmul.mubr.f32.gmra.mrb[0].mxu0 %v452
        %v1095 = vpop.f32.mrb[0].mxu0
        %v1096 = vadd.f32 %v1002, %v1095
        %v1097 = vpop.f32.mrb[0].mxu0
        %1098 = vmatprep.mubr.f32.mxu0 0.0
        %1099 = vmatmul.mubr.f32.gmra.mrb[0].mxu0 %v455
        %v1100 = vpop.f32.mrb[0].mxu0
        %v1101 = vadd.f32 %v1002, %v1100
        %v1102 = vpop.f32.mrb[0].mxu0
        %1103 = vmatprep.mubr.f32.mxu0 0.0
        %1104 = vmatmul.mubr.f32.gmra.mrb[0].mxu0 %v458
        %v1105 = vpop.f32.mrb[0].mxu0
        %v1106 = vadd.f32 %v1002, %v1105
        %v1107 = vpop.f32.mrb[0].mxu0
        %1108 = vmatprep.mubr.f32.mxu0 0.0
        %1109 = vmatmul.mubr.f32.gmra.mrb[0].mxu0 %v461
        %v1110 = vpop.f32.mrb[0].mxu0
        %v1111 = vadd.f32 %v1002, %v1110
        %v1112 = vpop.f32.mrb[0].mxu0
        %1113 = vmatprep.mubr.f32.mxu0 0.0
        %1114 = vmatmul.mubr.f32.gmra.mrb[0].mxu0 %v464
        %v1115 = vpop.f32.mrb[0].mxu0
        %v1116 = vadd.f32 %v1002, %v1115
        %v1117 = vpop.f32.mrb[0].mxu0
        %1118 = vmatprep.mubr.f32.mxu0 0.0
        %1119 = vmatmul.mubr.f32.gmra.mrb[0].mxu0 %v467
        %v1120 = vpop.f32.mrb[0].mxu0
        %v1121 = vadd.f32 %v1002, %v1120
        %v1122 = vpop.f32.mrb[0].mxu0
        %1123 = vmatprep.mubr.f32.mxu0 0.0
        %1124 = vmatmul.mubr.f32.gmra.mrb[0].mxu0 %v470
        %v1125 = vpop.f32.mrb[0].mxu0
        %v1126 = vadd.f32 %v1002, %v1125
        %v1127 = vpop.f32.mrb[0].mxu0
        %1128 = vmatprep.mubr.f32.mxu0 0.0
        %1129 = vmatmul.mubr.f32.gmra.mrb[0].mxu0 %v473
        %v1130 = vpop.f32.mrb[0].mxu0
        %v1131 = vadd.f32 %v1002, %v1130
        %v1132 = vpop.f32.mrb[0].mxu0
        %1133 = vmatprep.mubr.f32.mxu0 0.0
        %1134 = vmatmul.mubr.f32.gmra.mrb[0].mxu0 %v476
        %v1135 = vpop.f32.mrb[0].mxu0
        %v1136 = vadd.f32 %v1002, %v1135
        %v1137 = vpop.f32.mrb[0].mxu0
        %1138 = vmatprep.mubr.f32.mxu0 0.0
        %1139 = vmatmul.mubr.f32.gmra.mrb[0].mxu0 %v479
        %v1140 = vpop.f32.mrb[0].mxu0
        %v1141 = vadd.f32 %v1002, %v1140
        %v1142 = vpop.f32.mrb[0].mxu0
        %1143 = vmatprep.mubr.f32.mxu0 0.0
        %1144 = vmatmul.mubr.f32.gmra.mrb[0].mxu0 %v482
        %v1145 = vpop.f32.mrb[0].mxu0
        %v1146 = vadd.f32 %v1002, %v1145
        %v1147 = vpop.f32.mrb[0].mxu0
        %1148 = vmatprep.mubr.f32.mxu0 0.0
        %1149 = vmatmul.mubr.f32.gmra.mrb[0].mxu0 %v485
        %v1150 = vpop.f32.mrb[0].mxu0
        %v1151 = vadd.f32 %v1002, %v1150
        %v1152 = vpop.f32.mrb[0].mxu0
        %1153 = vmatprep.mubr.f32.mxu0 0.0
        %1154 = vmatmul.mubr.f32.gmra.mrb[0].mxu0 %v488
        %v1155 = vpop.f32.mrb[0].mxu0
        %v1156 = vadd.f32 %v1002, %v1155
        %v1157 = vpop.f32.mrb[0].mxu0
        %1158 = vmatprep.mubr.f32.mxu0 0.0
        %1159 = vmatmul.mubr.f32.gmra.mrb[0].mxu0 %v491
        %v1160 = vpop.f32.mrb[0].mxu0
        %v1161 = vadd.f32 %v1002, %v1160
        %v1162 = vpop.f32.mrb[0].mxu0
        %1163 = vmatprep.mubr.f32.mxu0 0.0
        %1164 = vmatmul.mubr.f32.gmra.mrb[0].mxu0 %v494
        %v1165 = vpop.f32.mrb[0].mxu0
        %v1166 = vadd.f32 %v1002, %v1165
        %v1167 = vpop.f32.mrb[0].mxu0
        %1168 = vmatprep.mubr.f32.mxu0 0.0
        %1169 = vmatmul.mubr.f32.gmra.mrb[0].mxu0 %v497
        %v1170 = vpop.f32.mrb[0].mxu0
        %v1171 = vadd.f32 %v1002, %v1170
        %v1172 = vpop.f32.mrb[0].mxu0
        %1173 = vmatprep.mubr.f32.mxu0 0.0
        %1174 = vmatmul.mubr.f32.gmra.mrb[0].mxu0 %v500
        %v1175 = vpop.f32.mrb[0].mxu0
        %v1176 = vadd.f32 %v1002, %v1175
        %v1177 = vpop.f32.mrb[0].mxu0
        %1178 = vmatprep.mubr.f32.mxu0 0.0
        %1179 = vmatmul.mubr.f32.gmra.mrb[0].mxu0 %v503
        %v1180 = vpop.f32.mrb[0].mxu0
        %v1181 = vadd.f32 %v1002, %v1180
        %v1182 = vpop.f32.mrb[0].mxu0
        %1183 = vmatprep.mubr.f32.mxu0 0.0
        %1184 = vmatmul.mubr.f32.gmra.mrb[0].mxu0 %v506
        %v1185 = vpop.f32.mrb[0].mxu0
        %v1186 = vadd.f32 %v1002, %v1185
        %v1187 = vpop.f32.mrb[0].mxu0
        %1188 = vmatprep.mubr.f32.mxu0 0.0
        %1189 = vmatmul.mubr.f32.gmra.mrb[0].mxu0 %v509
        %v1190 = vpop.f32.mrb[0].mxu0
        %v1191 = vadd.f32 %v1002, %v1190
        %v1192 = vpop.f32.mrb[0].mxu0
        %1193 = vmatprep.mubr.f32.mxu0 0.0
        %1194 = vmatmul.mubr.f32.gmra.mrb[0].mxu0 %v512
        %v1195 = vpop.f32.mrb[0].mxu0
        %v1196 = vadd.f32 %v1002, %v1195
        %v1197 = vpop.f32.mrb[0].mxu0
        %1198 = vmatprep.mubr.f32.mxu0 0.0
        %1199 = vmatmul.mubr.f32.gmra.mrb[0].mxu0 %v515
        %v1200 = vpop.f32.mrb[0].mxu0
        %v1201 = vadd.f32 %v1002, %v1200
        %v1202 = vpop.f32.mrb[0].mxu0
        %1203 = vmatprep.mubr.f32.mxu0 0.0
        %1204 = vmatmul.mubr.f32.gmra.mrb[0].mxu0 %v518
        %v1205 = vpop.f32.mrb[0].mxu0
        %v1206 = vadd.f32 %v1002, %v1205
        %v1207 = vpop.f32.mrb[0].mxu0
        %1208 = vmatprep.mubr.f32.mxu0 0.0
        %1209 = vmatmul.mubr.f32.gmra.mrb[0].mxu0 %v521
        %v1210 = vpop.f32.mrb[0].mxu0
        %v1211 = vadd.f32 %v1002, %v1210
        %v1212 = vpop.f32.mrb[0].mxu0
        %1213 = vmatprep.mubr.f32.mxu0 0.0
        %1214 = vmatmul.mubr.f32.gmra.mrb[0].mxu0 %v524
        %v1215 = vpop.f32.mrb[0].mxu0
        %v1216 = vadd.f32 %v1002, %v1215
        %v1217 = vpop.f32.mrb[0].mxu0
        %1218 = vmatprep.mubr.f32.mxu0 0.0
        %1219 = vmatmul.mubr.f32.gmra.mrb[0].mxu0 %v527
        %v1220 = vpop.f32.mrb[0].mxu0
        %v1221 = vadd.f32 %v1002, %v1220
        %v1222 = vpop.f32.mrb[0].mxu0
        %1223 = vmatprep.mubr.f32.mxu0 0.0
        %1224 = vmatmul.mubr.f32.gmra.mrb[0].mxu0 %v530
        %v1225 = vpop.f32.mrb[0].mxu0
        %v1226 = vadd.f32 %v1002, %v1225
        %v1227 = vpop.f32.mrb[0].mxu0
        %1228 = vdwg.mxu0
        %v1230 = vsel %vm435, %v599, 0
        %v1233 = vsel %vm435, %v604, 0
        %v1236 = vsel %vm435, %v609, 0
        %v1239 = vsel %vm435, %v614, 0
        %v1242 = vsel %vm435, %v619, 0
        %v1245 = vsel %vm435, %v624, 0
        %v1248 = vsel %vm435, %v629, 0
        %v1251 = vsel %vm435, %v634, 0
        %v1254 = vsel %vm435, %v639, 0
        %v1257 = vsel %vm435, %v644, 0
        %v1260 = vsel %vm435, %v649, 0
        %v1263 = vsel %vm435, %v654, 0
        %v1266 = vsel %vm435, %v659, 0
        %v1269 = vsel %vm435, %v664, 0
        %v1272 = vsel %vm435, %v669, 0
        %v1275 = vsel %vm435, %v674, 0
        %v1278 = vsel %vm435, %v679, 0
        %v1281 = vsel %vm435, %v684, 0
        %v1284 = vsel %vm435, %v689, 0
        %v1287 = vsel %vm435, %v694, 0
        %v1290 = vsel %vm435, %v699, 0
        %v1293 = vsel %vm435, %v704, 0
        %v1296 = vsel %vm435, %v709, 0
        %v1299 = vsel %vm435, %v714, 0
        %v1302 = vsel %vm435, %v719, 0
        %v1305 = vsel %vm435, %v724, 0
        %v1308 = vsel %vm435, %v729, 0
        %v1311 = vsel %vm435, %v734, 0
        %v1314 = vsel %vm435, %v739, 0
        %v1317 = vsel %vm435, %v744, 0
        %v1320 = vsel %vm435, %v749, 0
        %v1323 = vsel %vm435, %v754, 0
        %v1326 = vsel %vm435, %v835, 0
        %v1329 = vsel %vm435, %v840, 0
        %v1332 = vsel %vm435, %v845, 0
        %v1335 = vsel %vm435, %v850, 0
        %v1338 = vsel %vm435, %v855, 0
        %v1341 = vsel %vm435, %v860, 0
        %v1344 = vsel %vm435, %v865, 0
        %v1347 = vsel %vm435, %v870, 0
        %v1350 = vsel %vm435, %v875, 0
        %v1353 = vsel %vm435, %v880, 0
        %v1356 = vsel %vm435, %v885, 0
        %v1359 = vsel %vm435, %v890, 0
        %v1362 = vsel %vm435, %v895, 0
        %v1365 = vsel %vm435, %v900, 0
        %v1368 = vsel %vm435, %v905, 0
        %v1371 = vsel %vm435, %v910, 0
        %v1374 = vsel %vm435, %v915, 0
        %v1377 = vsel %vm435, %v920, 0
        %v1380 = vsel %vm435, %v925, 0
        %v1383 = vsel %vm435, %v930, 0
        %v1386 = vsel %vm435, %v935, 0
        %v1389 = vsel %vm435, %v940, 0
        %v1392 = vsel %vm435, %v945, 0
        %v1395 = vsel %vm435, %v950, 0
        %v1398 = vsel %vm435, %v955, 0
        %v1401 = vsel %vm435, %v960, 0
        %v1404 = vsel %vm435, %v965, 0
        %v1407 = vsel %vm435, %v970, 0
        %v1410 = vsel %vm435, %v975, 0
        %v1413 = vsel %vm435, %v980, 0
        %v1416 = vsel %vm435, %v985, 0
        %v1419 = vsel %vm435, %v990, 0
        %1421 = vmatprep.subr.mxu0 0.0
        %1422 = vmatpush1.xpose.msra.mxu0 %v1326
        %1423 = vmatprep.subr.mxu0 0.0
        %1424 = vmatpush1.xpose.msra.mxu0 %v1329
        %1425 = vmatprep.subr.mxu0 0.0
        %1426 = vmatpush1.xpose.msra.mxu0 %v1332
        %1427 = vmatprep.subr.mxu0 0.0
        %1428 = vmatpush1.xpose.msra.mxu0 %v1335
        %1429 = vmatprep.subr.mxu0 0.0
        %1430 = vmatpush1.xpose.msra.mxu0 %v1338
        %1431 = vmatprep.subr.mxu0 0.0
        %1432 = vmatpush1.xpose.msra.mxu0 %v1341
        %1433 = vmatprep.subr.mxu0 0.0
        %1434 = vmatpush1.xpose.msra.mxu0 %v1344
        %1435 = vmatprep.subr.mxu0 0.0
        %1436 = vmatpush1.xpose.msra.mxu0 %v1347
        %1437 = vmatprep.subr.mxu0 0.0
        %1438 = vmatpush1.xpose.msra.mxu0 %v1350
        %1439 = vmatprep.subr.mxu0 0.0
        %1440 = vmatpush1.xpose.msra.mxu0 %v1353
        %1441 = vmatprep.subr.mxu0 0.0
        %1442 = vmatpush1.xpose.msra.mxu0 %v1356
        %1443 = vmatprep.subr.mxu0 0.0
        %1444 = vmatpush1.xpose.msra.mxu0 %v1359
        %1445 = vmatprep.subr.mxu0 0.0
        %1446 = vmatpush1.xpose.msra.mxu0 %v1362
        %1447 = vmatprep.subr.mxu0 0.0
        %1448 = vmatpush1.xpose.msra.mxu0 %v1365
        %1449 = vmatprep.subr.mxu0 0.0
        %1450 = vmatpush1.xpose.msra.mxu0 %v1368
        %1451 = vmatprep.subr.mxu0 0.0
        %1452 = vmatpush1.xpose.msra.mxu0 %v1371
        %1453 = vmatprep.subr.mxu0 0.0
        %1454 = vmatpush1.xpose.msra.mxu0 %v1374
        %1455 = vmatprep.subr.mxu0 0.0
        %1456 = vmatpush1.xpose.msra.mxu0 %v1377
        %1457 = vmatprep.subr.mxu0 0.0
        %1458 = vmatpush1.xpose.msra.mxu0 %v1380
        %1459 = vmatprep.subr.mxu0 0.0
        %1460 = vmatpush1.xpose.msra.mxu0 %v1383
        %1461 = vmatprep.subr.mxu0 0.0
        %1462 = vmatpush1.xpose.msra.mxu0 %v1386
        %1463 = vmatprep.subr.mxu0 0.0
        %1464 = vmatpush1.xpose.msra.mxu0 %v1389
        %1465 = vmatprep.subr.mxu0 0.0
        %1466 = vmatpush1.xpose.msra.mxu0 %v1392
        %1467 = vmatprep.subr.mxu0 0.0
        %1468 = vmatpush1.xpose.msra.mxu0 %v1395
        %1469 = vmatprep.subr.mxu0 0.0
        %1470 = vmatpush1.xpose.msra.mxu0 %v1398
        %1471 = vmatprep.subr.mxu0 0.0
        %1472 = vmatpush1.xpose.msra.mxu0 %v1401
        %1473 = vmatprep.subr.mxu0 0.0
        %1474 = vmatpush1.xpose.msra.mxu0 %v1404
        %1475 = vmatprep.subr.mxu0 0.0
        %1476 = vmatpush1.xpose.msra.mxu0 %v1407
        %1477 = vmatprep.subr.mxu0 0.0
        %1478 = vmatpush1.xpose.msra.mxu0 %v1410
        %1479 = vmatprep.subr.mxu0 0.0
        %1480 = vmatpush1.xpose.msra.mxu0 %v1413
        %1481 = vmatprep.subr.mxu0 0.0
        %1482 = vmatpush1.xpose.msra.mxu0 %v1416
        %1483 = vmatprep.subr.mxu0 0.0
        %1484 = vmatpush1.xpose.msra.mxu0 %v1419
        %1485 = vmatprep.mubr.f32.mxu0 0.0
        %1486 = vmatmul.mubr.f32.gmra.mrb[0].mxu0 %v1230
        %v1487 = vpop.f32.mrb[0].mxu0
        %v1488 = vadd.f32 0.0, %v1487
        %v1489 = vpop.f32.mrb[0].mxu0
        %v1490 = vadd.f32 0.0, %v1489
        %1491 = vmatprep.mubr.f32.mxu0 0.0
        %1492 = vmatmul.mubr.f32.gmra.mrb[0].mxu0 %v1233
        %v1493 = vpop.f32.mrb[0].mxu0
        %v1494 = vadd.f32 0.0, %v1493
        %v1495 = vpop.f32.mrb[0].mxu0
        %v1496 = vadd.f32 0.0, %v1495
        %1497 = vmatprep.mubr.f32.mxu0 0.0
        %1498 = vmatmul.mubr.f32.gmra.mrb[0].mxu0 %v1236
        %v1499 = vpop.f32.mrb[0].mxu0
        %v1500 = vadd.f32 0.0, %v1499
        %v1501 = vpop.f32.mrb[0].mxu0
        %v1502 = vadd.f32 0.0, %v1501
        %1503 = vmatprep.mubr.f32.mxu0 0.0
        %1504 = vmatmul.mubr.f32.gmra.mrb[0].mxu0 %v1239
        %v1505 = vpop.f32.mrb[0].mxu0
        %v1506 = vadd.f32 0.0, %v1505
        %v1507 = vpop.f32.mrb[0].mxu0
        %v1508 = vadd.f32 0.0, %v1507
        %1509 = vmatprep.mubr.f32.mxu0 0.0
        %1510 = vmatmul.mubr.f32.gmra.mrb[0].mxu0 %v1242
        %v1511 = vpop.f32.mrb[0].mxu0
        %v1512 = vadd.f32 0.0, %v1511
        %v1513 = vpop.f32.mrb[0].mxu0
        %v1514 = vadd.f32 0.0, %v1513
        %1515 = vmatprep.mubr.f32.mxu0 0.0
        %1516 = vmatmul.mubr.f32.gmra.mrb[0].mxu0 %v1245
        %v1517 = vpop.f32.mrb[0].mxu0
        %v1518 = vadd.f32 0.0, %v1517
        %v1519 = vpop.f32.mrb[0].mxu0
        %v1520 = vadd.f32 0.0, %v1519
        %1521 = vmatprep.mubr.f32.mxu0 0.0
        %1522 = vmatmul.mubr.f32.gmra.mrb[0].mxu0 %v1248
        %v1523 = vpop.f32.mrb[0].mxu0
        %v1524 = vadd.f32 0.0, %v1523
        %v1525 = vpop.f32.mrb[0].mxu0
        %v1526 = vadd.f32 0.0, %v1525
        %1527 = vmatprep.mubr.f32.mxu0 0.0
        %1528 = vmatmul.mubr.f32.gmra.mrb[0].mxu0 %v1251
        %v1529 = vpop.f32.mrb[0].mxu0
        %v1530 = vadd.f32 0.0, %v1529
        %v1531 = vpop.f32.mrb[0].mxu0
        %v1532 = vadd.f32 0.0, %v1531
        %1533 = vmatprep.mubr.f32.mxu0 0.0
        %1534 = vmatmul.mubr.f32.gmra.mrb[0].mxu0 %v1254
        %v1535 = vpop.f32.mrb[0].mxu0
        %v1536 = vadd.f32 0.0, %v1535
        %v1537 = vpop.f32.mrb[0].mxu0
        %v1538 = vadd.f32 0.0, %v1537
        %1539 = vmatprep.mubr.f32.mxu0 0.0
        %1540 = vmatmul.mubr.f32.gmra.mrb[0].mxu0 %v1257
        %v1541 = vpop.f32.mrb[0].mxu0
        %v1542 = vadd.f32 0.0, %v1541
        %v1543 = vpop.f32.mrb[0].mxu0
        %v1544 = vadd.f32 0.0, %v1543
        %1545 = vmatprep.mubr.f32.mxu0 0.0
        %1546 = vmatmul.mubr.f32.gmra.mrb[0].mxu0 %v1260
        %v1547 = vpop.f32.mrb[0].mxu0
        %v1548 = vadd.f32 0.0, %v1547
        %v1549 = vpop.f32.mrb[0].mxu0
        %v1550 = vadd.f32 0.0, %v1549
        %1551 = vmatprep.mubr.f32.mxu0 0.0
        %1552 = vmatmul.mubr.f32.gmra.mrb[0].mxu0 %v1263
        %v1553 = vpop.f32.mrb[0].mxu0
        %v1554 = vadd.f32 0.0, %v1553
        %v1555 = vpop.f32.mrb[0].mxu0
        %v1556 = vadd.f32 0.0, %v1555
        %1557 = vmatprep.mubr.f32.mxu0 0.0
        %1558 = vmatmul.mubr.f32.gmra.mrb[0].mxu0 %v1266
        %v1559 = vpop.f32.mrb[0].mxu0
        %v1560 = vadd.f32 0.0, %v1559
        %v1561 = vpop.f32.mrb[0].mxu0
        %v1562 = vadd.f32 0.0, %v1561
        %1563 = vmatprep.mubr.f32.mxu0 0.0
        %1564 = vmatmul.mubr.f32.gmra.mrb[0].mxu0 %v1269
        %v1565 = vpop.f32.mrb[0].mxu0
        %v1566 = vadd.f32 0.0, %v1565
        %v1567 = vpop.f32.mrb[0].mxu0
        %v1568 = vadd.f32 0.0, %v1567
        %1569 = vmatprep.mubr.f32.mxu0 0.0
        %1570 = vmatmul.mubr.f32.gmra.mrb[0].mxu0 %v1272
        %v1571 = vpop.f32.mrb[0].mxu0
        %v1572 = vadd.f32 0.0, %v1571
        %v1573 = vpop.f32.mrb[0].mxu0
        %v1574 = vadd.f32 0.0, %v1573
        %1575 = vmatprep.mubr.f32.mxu0 0.0
        %1576 = vmatmul.mubr.f32.gmra.mrb[0].mxu0 %v1275
        %v1577 = vpop.f32.mrb[0].mxu0
        %v1578 = vadd.f32 0.0, %v1577
        %v1579 = vpop.f32.mrb[0].mxu0
        %v1580 = vadd.f32 0.0, %v1579
        %1581 = vmatprep.mubr.f32.mxu0 0.0
        %1582 = vmatmul.mubr.f32.gmra.mrb[0].mxu0 %v1278
        %v1583 = vpop.f32.mrb[0].mxu0
        %v1584 = vadd.f32 0.0, %v1583
        %v1585 = vpop.f32.mrb[0].mxu0
        %v1586 = vadd.f32 0.0, %v1585
        %1587 = vmatprep.mubr.f32.mxu0 0.0
        %1588 = vmatmul.mubr.f32.gmra.mrb[0].mxu0 %v1281
        %v1589 = vpop.f32.mrb[0].mxu0
        %v1590 = vadd.f32 0.0, %v1589
        %v1591 = vpop.f32.mrb[0].mxu0
        %v1592 = vadd.f32 0.0, %v1591
        %1593 = vmatprep.mubr.f32.mxu0 0.0
        %1594 = vmatmul.mubr.f32.gmra.mrb[0].mxu0 %v1284
        %v1595 = vpop.f32.mrb[0].mxu0
        %v1596 = vadd.f32 0.0, %v1595
        %v1597 = vpop.f32.mrb[0].mxu0
        %v1598 = vadd.f32 0.0, %v1597
        %1599 = vmatprep.mubr.f32.mxu0 0.0
        %1600 = vmatmul.mubr.f32.gmra.mrb[0].mxu0 %v1287
        %v1601 = vpop.f32.mrb[0].mxu0
        %v1602 = vadd.f32 0.0, %v1601
        %v1603 = vpop.f32.mrb[0].mxu0
        %v1604 = vadd.f32 0.0, %v1603
        %1605 = vmatprep.mubr.f32.mxu0 0.0
        %1606 = vmatmul.mubr.f32.gmra.mrb[0].mxu0 %v1290
        %v1607 = vpop.f32.mrb[0].mxu0
        %v1608 = vadd.f32 0.0, %v1607
        %v1609 = vpop.f32.mrb[0].mxu0
        %v1610 = vadd.f32 0.0, %v1609
        %1611 = vmatprep.mubr.f32.mxu0 0.0
        %1612 = vmatmul.mubr.f32.gmra.mrb[0].mxu0 %v1293
        %v1613 = vpop.f32.mrb[0].mxu0
        %v1614 = vadd.f32 0.0, %v1613
        %v1615 = vpop.f32.mrb[0].mxu0
        %v1616 = vadd.f32 0.0, %v1615
        %1617 = vmatprep.mubr.f32.mxu0 0.0
        %1618 = vmatmul.mubr.f32.gmra.mrb[0].mxu0 %v1296
        %v1619 = vpop.f32.mrb[0].mxu0
        %v1620 = vadd.f32 0.0, %v1619
        %v1621 = vpop.f32.mrb[0].mxu0
        %v1622 = vadd.f32 0.0, %v1621
        %1623 = vmatprep.mubr.f32.mxu0 0.0
        %1624 = vmatmul.mubr.f32.gmra.mrb[0].mxu0 %v1299
        %v1625 = vpop.f32.mrb[0].mxu0
        %v1626 = vadd.f32 0.0, %v1625
        %v1627 = vpop.f32.mrb[0].mxu0
        %v1628 = vadd.f32 0.0, %v1627
        %1629 = vmatprep.mubr.f32.mxu0 0.0
        %1630 = vmatmul.mubr.f32.gmra.mrb[0].mxu0 %v1302
        %v1631 = vpop.f32.mrb[0].mxu0
        %v1632 = vadd.f32 0.0, %v1631
        %v1633 = vpop.f32.mrb[0].mxu0
        %v1634 = vadd.f32 0.0, %v1633
        %1635 = vmatprep.mubr.f32.mxu0 0.0
        %1636 = vmatmul.mubr.f32.gmra.mrb[0].mxu0 %v1305
        %v1637 = vpop.f32.mrb[0].mxu0
        %v1638 = vadd.f32 0.0, %v1637
        %v1639 = vpop.f32.mrb[0].mxu0
        %v1640 = vadd.f32 0.0, %v1639
        %1641 = vmatprep.mubr.f32.mxu0 0.0
        %1642 = vmatmul.mubr.f32.gmra.mrb[0].mxu0 %v1308
        %v1643 = vpop.f32.mrb[0].mxu0
        %v1644 = vadd.f32 0.0, %v1643
        %v1645 = vpop.f32.mrb[0].mxu0
        %v1646 = vadd.f32 0.0, %v1645
        %1647 = vmatprep.mubr.f32.mxu0 0.0
        %1648 = vmatmul.mubr.f32.gmra.mrb[0].mxu0 %v1311
        %v1649 = vpop.f32.mrb[0].mxu0
        %v1650 = vadd.f32 0.0, %v1649
        %v1651 = vpop.f32.mrb[0].mxu0
        %v1652 = vadd.f32 0.0, %v1651
        %1653 = vmatprep.mubr.f32.mxu0 0.0
        %1654 = vmatmul.mubr.f32.gmra.mrb[0].mxu0 %v1314
        %v1655 = vpop.f32.mrb[0].mxu0
        %v1656 = vadd.f32 0.0, %v1655
        %v1657 = vpop.f32.mrb[0].mxu0
        %v1658 = vadd.f32 0.0, %v1657
        %1659 = vmatprep.mubr.f32.mxu0 0.0
        %1660 = vmatmul.mubr.f32.gmra.mrb[0].mxu0 %v1317
        %v1661 = vpop.f32.mrb[0].mxu0
        %v1662 = vadd.f32 0.0, %v1661
        %v1663 = vpop.f32.mrb[0].mxu0
        %v1664 = vadd.f32 0.0, %v1663
        %1665 = vmatprep.mubr.f32.mxu0 0.0
        %1666 = vmatmul.mubr.f32.gmra.mrb[0].mxu0 %v1320
        %v1667 = vpop.f32.mrb[0].mxu0
        %v1668 = vadd.f32 0.0, %v1667
        %v1669 = vpop.f32.mrb[0].mxu0
        %v1670 = vadd.f32 0.0, %v1669
        %1671 = vmatprep.mubr.f32.mxu0 0.0
        %1672 = vmatmul.mubr.f32.gmra.mrb[0].mxu0 %v1323
        %v1673 = vpop.f32.mrb[0].mxu0
        %v1674 = vadd.f32 0.0, %v1673
        %v1675 = vpop.f32.mrb[0].mxu0
        %v1676 = vadd.f32 0.0, %v1675
        %1677 = vdwg.mxu0
        %v1678 = vmax.f32 %v1488, %v1490
        %1679 = vmax.xlane.f32.xlu0 %v1678
        %v1680 = vpop.xlane.xlu0 %1679
        %v1681 = vmax.f32 %v1494, %v1496
        %1682 = vmax.xlane.f32.xlu0 %v1681
        %v1683 = vpop.xlane.xlu0 %1682
        %v1684 = vmax.f32 %v1500, %v1502
        %1685 = vmax.xlane.f32.xlu0 %v1684
        %v1686 = vpop.xlane.xlu0 %1685
        %v1687 = vmax.f32 %v1506, %v1508
        %1688 = vmax.xlane.f32.xlu0 %v1687
        %v1689 = vpop.xlane.xlu0 %1688
        %v1690 = vmax.f32 %v1512, %v1514
        %1691 = vmax.xlane.f32.xlu0 %v1690
        %v1692 = vpop.xlane.xlu0 %1691
        %v1693 = vmax.f32 %v1518, %v1520
        %1694 = vmax.xlane.f32.xlu0 %v1693
        %v1695 = vpop.xlane.xlu0 %1694
        %v1696 = vmax.f32 %v1524, %v1526
        %1697 = vmax.xlane.f32.xlu0 %v1696
        %v1698 = vpop.xlane.xlu0 %1697
        %v1699 = vmax.f32 %v1530, %v1532
        %1700 = vmax.xlane.f32.xlu0 %v1699
        %v1701 = vpop.xlane.xlu0 %1700
        %v1702 = vmax.f32 %v1536, %v1538
        %1703 = vmax.xlane.f32.xlu0 %v1702
        %v1704 = vpop.xlane.xlu0 %1703
        %v1705 = vmax.f32 %v1542, %v1544
        %1706 = vmax.xlane.f32.xlu0 %v1705
        %v1707 = vpop.xlane.xlu0 %1706
        %v1708 = vmax.f32 %v1548, %v1550
        %1709 = vmax.xlane.f32.xlu0 %v1708
        %v1710 = vpop.xlane.xlu0 %1709
        %v1711 = vmax.f32 %v1554, %v1556
        %1712 = vmax.xlane.f32.xlu0 %v1711
        %v1713 = vpop.xlane.xlu0 %1712
        %v1714 = vmax.f32 %v1560, %v1562
        %1715 = vmax.xlane.f32.xlu0 %v1714
        %v1716 = vpop.xlane.xlu0 %1715
        %v1717 = vmax.f32 %v1566, %v1568
        %1718 = vmax.xlane.f32.xlu0 %v1717
        %v1719 = vpop.xlane.xlu0 %1718
        %v1720 = vmax.f32 %v1572, %v1574
        %1721 = vmax.xlane.f32.xlu0 %v1720
        %v1722 = vpop.xlane.xlu0 %1721
        %v1723 = vmax.f32 %v1578, %v1580
        %1724 = vmax.xlane.f32.xlu0 %v1723
        %v1725 = vpop.xlane.xlu0 %1724
        %v1726 = vmax.f32 %v1584, %v1586
        %1727 = vmax.xlane.f32.xlu0 %v1726
        %v1728 = vpop.xlane.xlu0 %1727
        %v1729 = vmax.f32 %v1590, %v1592
        %1730 = vmax.xlane.f32.xlu0 %v1729
        %v1731 = vpop.xlane.xlu0 %1730
        %v1732 = vmax.f32 %v1596, %v1598
        %1733 = vmax.xlane.f32.xlu0 %v1732
        %v1734 = vpop.xlane.xlu0 %1733
        %v1735 = vmax.f32 %v1602, %v1604
        %1736 = vmax.xlane.f32.xlu0 %v1735
        %v1737 = vpop.xlane.xlu0 %1736
        %v1738 = vmax.f32 %v1608, %v1610
        %1739 = vmax.xlane.f32.xlu0 %v1738
        %v1740 = vpop.xlane.xlu0 %1739
        %v1741 = vmax.f32 %v1614, %v1616
        %1742 = vmax.xlane.f32.xlu0 %v1741
        %v1743 = vpop.xlane.xlu0 %1742
        %v1744 = vmax.f32 %v1620, %v1622
        %1745 = vmax.xlane.f32.xlu0 %v1744
        %v1746 = vpop.xlane.xlu0 %1745
        %v1747 = vmax.f32 %v1626, %v1628
        %1748 = vmax.xlane.f32.xlu0 %v1747
        %v1749 = vpop.xlane.xlu0 %1748
        %v1750 = vmax.f32 %v1632, %v1634
        %1751 = vmax.xlane.f32.xlu0 %v1750
        %v1752 = vpop.xlane.xlu0 %1751
        %v1753 = vmax.f32 %v1638, %v1640
        %1754 = vmax.xlane.f32.xlu0 %v1753
        %v1755 = vpop.xlane.xlu0 %1754
        %v1756 = vmax.f32 %v1644, %v1646
        %1757 = vmax.xlane.f32.xlu0 %v1756
        %v1758 = vpop.xlane.xlu0 %1757
        %v1759 = vmax.f32 %v1650, %v1652
        %1760 = vmax.xlane.f32.xlu0 %v1759
        %v1761 = vpop.xlane.xlu0 %1760
        %v1762 = vmax.f32 %v1656, %v1658
        %1763 = vmax.xlane.f32.xlu0 %v1762
        %v1764 = vpop.xlane.xlu0 %1763
        %v1765 = vmax.f32 %v1662, %v1664
        %1766 = vmax.xlane.f32.xlu0 %v1765
        %v1767 = vpop.xlane.xlu0 %1766
        %v1768 = vmax.f32 %v1668, %v1670
        %1769 = vmax.xlane.f32.xlu0 %v1768
        %v1770 = vpop.xlane.xlu0 %1769
        %v1771 = vmax.f32 %v1674, %v1676
        %1772 = vmax.xlane.f32.xlu0 %v1771
        %v1773 = vpop.xlane.xlu0 %1772
        %v1774 = vsub.f32 %v1488, %v1680
        %v1775 = vsub.f32 %v1490, %v1680
        %v1776 = vsub.f32 %v1494, %v1683
        %v1777 = vsub.f32 %v1496, %v1683
        %v1778 = vsub.f32 %v1500, %v1686
        %v1779 = vsub.f32 %v1502, %v1686
        %v1780 = vsub.f32 %v1506, %v1689
        %v1781 = vsub.f32 %v1508, %v1689
        %v1782 = vsub.f32 %v1512, %v1692
        %v1783 = vsub.f32 %v1514, %v1692
        %v1784 = vsub.f32 %v1518, %v1695
        %v1785 = vsub.f32 %v1520, %v1695
        %v1786 = vsub.f32 %v1524, %v1698
        %v1787 = vsub.f32 %v1526, %v1698
        %v1788 = vsub.f32 %v1530, %v1701
        %v1789 = vsub.f32 %v1532, %v1701
        %v1790 = vsub.f32 %v1536, %v1704
        %v1791 = vsub.f32 %v1538, %v1704
        %v1792 = vsub.f32 %v1542, %v1707
        %v1793 = vsub.f32 %v1544, %v1707
        %v1794 = vsub.f32 %v1548, %v1710
        %v1795 = vsub.f32 %v1550, %v1710
        %v1796 = vsub.f32 %v1554, %v1713
        %v1797 = vsub.f32 %v1556, %v1713
        %v1798 = vsub.f32 %v1560, %v1716
        %v1799 = vsub.f32 %v1562, %v1716
        %v1800 = vsub.f32 %v1566, %v1719
        %v1801 = vsub.f32 %v1568, %v1719
        %v1802 = vsub.f32 %v1572, %v1722
        %v1803 = vsub.f32 %v1574, %v1722
        %v1804 = vsub.f32 %v1578, %v1725
        %v1805 = vsub.f32 %v1580, %v1725
        %v1806 = vsub.f32 %v1584, %v1728
        %v1807 = vsub.f32 %v1586, %v1728
        %v1808 = vsub.f32 %v1590, %v1731
        %v1809 = vsub.f32 %v1592, %v1731
        %v1810 = vsub.f32 %v1596, %v1734
        %v1811 = vsub.f32 %v1598, %v1734
        %v1812 = vsub.f32 %v1602, %v1737
        %v1813 = vsub.f32 %v1604, %v1737
        %v1814 = vsub.f32 %v1608, %v1740
        %v1815 = vsub.f32 %v1610, %v1740
        %v1816 = vsub.f32 %v1614, %v1743
        %v1817 = vsub.f32 %v1616, %v1743
        %v1818 = vsub.f32 %v1620, %v1746
        %v1819 = vsub.f32 %v1622, %v1746
        %v1820 = vsub.f32 %v1626, %v1749
        %v1821 = vsub.f32 %v1628, %v1749
        %v1822 = vsub.f32 %v1632, %v1752
        %v1823 = vsub.f32 %v1634, %v1752
        %v1824 = vsub.f32 %v1638, %v1755
        %v1825 = vsub.f32 %v1640, %v1755
        %v1826 = vsub.f32 %v1644, %v1758
        %v1827 = vsub.f32 %v1646, %v1758
        %v1828 = vsub.f32 %v1650, %v1761
        %v1829 = vsub.f32 %v1652, %v1761
        %v1830 = vsub.f32 %v1656, %v1764
        %v1831 = vsub.f32 %v1658, %v1764
        %v1832 = vsub.f32 %v1662, %v1767
        %v1833 = vsub.f32 %v1664, %v1767
        %v1834 = vsub.f32 %v1668, %v1770
        %v1835 = vsub.f32 %v1670, %v1770
        %v1836 = vsub.f32 %v1674, %v1773
        %v1837 = vsub.f32 %v1676, %v1773
        %v1838 = vmul.f32 %v1774, 1.442695
        %v1839 = vpow.pop %v1838
        %v1840 = vmul.f32 %v1775, 1.442695
        %v1841 = vpow.pop %v1840
        %v1842 = vmul.f32 %v1776, 1.442695
        %v1843 = vpow.pop %v1842
        %v1844 = vmul.f32 %v1777, 1.442695
        %v1845 = vpow.pop %v1844
        %v1846 = vmul.f32 %v1778, 1.442695
        %v1847 = vpow.pop %v1846
        %v1848 = vmul.f32 %v1779, 1.442695
        %v1849 = vpow.pop %v1848
        %v1850 = vmul.f32 %v1780, 1.442695
        %v1851 = vpow.pop %v1850
        %v1852 = vmul.f32 %v1781, 1.442695
        %v1853 = vpow.pop %v1852
        %v1854 = vmul.f32 %v1782, 1.442695
        %v1855 = vpow.pop %v1854
        %v1856 = vmul.f32 %v1783, 1.442695
        %v1857 = vpow.pop %v1856
        %v1858 = vmul.f32 %v1784, 1.442695
        %v1859 = vpow.pop %v1858
        %v1860 = vmul.f32 %v1785, 1.442695
        %v1861 = vpow.pop %v1860
        %v1862 = vmul.f32 %v1786, 1.442695
        %v1863 = vpow.pop %v1862
        %v1864 = vmul.f32 %v1787, 1.442695
        %v1865 = vpow.pop %v1864
        %v1866 = vmul.f32 %v1788, 1.442695
        %v1867 = vpow.pop %v1866
        %v1868 = vmul.f32 %v1789, 1.442695
        %v1869 = vpow.pop %v1868
        %v1870 = vmul.f32 %v1790, 1.442695
        %v1871 = vpow.pop %v1870
        %v1872 = vmul.f32 %v1791, 1.442695
        %v1873 = vpow.pop %v1872
        %v1874 = vmul.f32 %v1792, 1.442695
        %v1875 = vpow.pop %v1874
        %v1876 = vmul.f32 %v1793, 1.442695
        %v1877 = vpow.pop %v1876
        %v1878 = vmul.f32 %v1794, 1.442695
        %v1879 = vpow.pop %v1878
        %v1880 = vmul.f32 %v1795, 1.442695
        %v1881 = vpow.pop %v1880
        %v1882 = vmul.f32 %v1796, 1.442695
        %v1883 = vpow.pop %v1882
        %v1884 = vmul.f32 %v1797, 1.442695
        %v1885 = vpow.pop %v1884
        %v1886 = vmul.f32 %v1798, 1.442695
        %v1887 = vpow.pop %v1886
        %v1888 = vmul.f32 %v1799, 1.442695
        %v1889 = vpow.pop %v1888
        %v1890 = vmul.f32 %v1800, 1.442695
        %v1891 = vpow.pop %v1890
        %v1892 = vmul.f32 %v1801, 1.442695
        %v1893 = vpow.pop %v1892
        %v1894 = vmul.f32 %v1802, 1.442695
        %v1895 = vpow.pop %v1894
        %v1896 = vmul.f32 %v1803, 1.442695
        %v1897 = vpow.pop %v1896
        %v1898 = vmul.f32 %v1804, 1.442695
        %v1899 = vpow.pop %v1898
        %v1900 = vmul.f32 %v1805, 1.442695
        %v1901 = vpow.pop %v1900
        %v1902 = vmul.f32 %v1806, 1.442695
        %v1903 = vpow.pop %v1902
        %v1904 = vmul.f32 %v1807, 1.442695
        %v1905 = vpow.pop %v1904
        %v1906 = vmul.f32 %v1808, 1.442695
        %v1907 = vpow.pop %v1906
        %v1908 = vmul.f32 %v1809, 1.442695
        %v1909 = vpow.pop %v1908
        %v1910 = vmul.f32 %v1810, 1.442695
        %v1911 = vpow.pop %v1910
        %v1912 = vmul.f32 %v1811, 1.442695
        %v1913 = vpow.pop %v1912
        %v1914 = vmul.f32 %v1812, 1.442695
        %v1915 = vpow.pop %v1914
        %v1916 = vmul.f32 %v1813, 1.442695
        %v1917 = vpow.pop %v1916
        %v1918 = vmul.f32 %v1814, 1.442695
        %v1919 = vpow.pop %v1918
        %v1920 = vmul.f32 %v1815, 1.442695
        %v1921 = vpow.pop %v1920
        %v1922 = vmul.f32 %v1816, 1.442695
        %v1923 = vpow.pop %v1922
        %v1924 = vmul.f32 %v1817, 1.442695
        %v1925 = vpow.pop %v1924
        %v1926 = vmul.f32 %v1818, 1.442695
        %v1927 = vpow.pop %v1926
        %v1928 = vmul.f32 %v1819, 1.442695
        %v1929 = vpow.pop %v1928
        %v1930 = vmul.f32 %v1820, 1.442695
        %v1931 = vpow.pop %v1930
        %v1932 = vmul.f32 %v1821, 1.442695
        %v1933 = vpow.pop %v1932
        %v1934 = vmul.f32 %v1822, 1.442695
        %v1935 = vpow.pop %v1934
        %v1936 = vmul.f32 %v1823, 1.442695
        %v1937 = vpow.pop %v1936
        %v1938 = vmul.f32 %v1824, 1.442695
        %v1939 = vpow.pop %v1938
        %v1940 = vmul.f32 %v1825, 1.442695
        %v1941 = vpow.pop %v1940
        %v1942 = vmul.f32 %v1826, 1.442695
        %v1943 = vpow.pop %v1942
        %v1944 = vmul.f32 %v1827, 1.442695
        %v1945 = vpow.pop %v1944
        %v1946 = vmul.f32 %v1828, 1.442695
        %v1947 = vpow.pop %v1946
        %v1948 = vmul.f32 %v1829, 1.442695
        %v1949 = vpow.pop %v1948
        %v1950 = vmul.f32 %v1830, 1.442695
        %v1951 = vpow.pop %v1950
        %v1952 = vmul.f32 %v1831, 1.442695
        %v1953 = vpow.pop %v1952
        %v1954 = vmul.f32 %v1832, 1.442695
        %v1955 = vpow.pop %v1954
        %v1956 = vmul.f32 %v1833, 1.442695
        %v1957 = vpow.pop %v1956
        %v1958 = vmul.f32 %v1834, 1.442695
        %v1959 = vpow.pop %v1958
        %v1960 = vmul.f32 %v1835, 1.442695
        %v1961 = vpow.pop %v1960
        %v1962 = vmul.f32 %v1836, 1.442695
        %v1963 = vpow.pop %v1962
        %v1964 = vmul.f32 %v1837, 1.442695
        %v1965 = vpow.pop %v1964
        %v1966 = vadd.f32 %v1839, %v1841
        %1967 = vadd.xlane.f32.xlu0 %v1966
        %v1968 = vpop.xlane.xlu0 %1967
        %v1969 = vadd.f32 %v1843, %v1845
        %1970 = vadd.xlane.f32.xlu0 %v1969
        %v1971 = vpop.xlane.xlu0 %1970
        %v1972 = vadd.f32 %v1847, %v1849
        %1973 = vadd.xlane.f32.xlu0 %v1972
        %v1974 = vpop.xlane.xlu0 %1973
        %v1975 = vadd.f32 %v1851, %v1853
        %1976 = vadd.xlane.f32.xlu0 %v1975
        %v1977 = vpop.xlane.xlu0 %1976
        %v1978 = vadd.f32 %v1855, %v1857
        %1979 = vadd.xlane.f32.xlu0 %v1978
        %v1980 = vpop.xlane.xlu0 %1979
        %v1981 = vadd.f32 %v1859, %v1861
        %1982 = vadd.xlane.f32.xlu0 %v1981
        %v1983 = vpop.xlane.xlu0 %1982
        %v1984 = vadd.f32 %v1863, %v1865
        %1985 = vadd.xlane.f32.xlu0 %v1984
        %v1986 = vpop.xlane.xlu0 %1985
        %v1987 = vadd.f32 %v1867, %v1869
        %1988 = vadd.xlane.f32.xlu0 %v1987
        %v1989 = vpop.xlane.xlu0 %1988
        %v1990 = vadd.f32 %v1871, %v1873
        %1991 = vadd.xlane.f32.xlu0 %v1990
        %v1992 = vpop.xlane.xlu0 %1991
        %v1993 = vadd.f32 %v1875, %v1877
        %1994 = vadd.xlane.f32.xlu0 %v1993
        %v1995 = vpop.xlane.xlu0 %1994
        %v1996 = vadd.f32 %v1879, %v1881
        %1997 = vadd.xlane.f32.xlu0 %v1996
        %v1998 = vpop.xlane.xlu0 %1997
        %v1999 = vadd.f32 %v1883, %v1885
        %2000 = vadd.xlane.f32.xlu0 %v1999
        %v2001 = vpop.xlane.xlu0 %2000
        %v2002 = vadd.f32 %v1887, %v1889
        %2003 = vadd.xlane.f32.xlu0 %v2002
        %v2004 = vpop.xlane.xlu0 %2003
        %v2005 = vadd.f32 %v1891, %v1893
        %2006 = vadd.xlane.f32.xlu0 %v2005
        %v2007 = vpop.xlane.xlu0 %2006
        %v2008 = vadd.f32 %v1895, %v1897
        %2009 = vadd.xlane.f32.xlu0 %v2008
        %v2010 = vpop.xlane.xlu0 %2009
        %v2011 = vadd.f32 %v1899, %v1901
        %2012 = vadd.xlane.f32.xlu0 %v2011
        %v2013 = vpop.xlane.xlu0 %2012
        %v2014 = vadd.f32 %v1903, %v1905
        %2015 = vadd.xlane.f32.xlu0 %v2014
        %v2016 = vpop.xlane.xlu0 %2015
        %v2017 = vadd.f32 %v1907, %v1909
        %2018 = vadd.xlane.f32.xlu0 %v2017
        %v2019 = vpop.xlane.xlu0 %2018
        %v2020 = vadd.f32 %v1911, %v1913
        %2021 = vadd.xlane.f32.xlu0 %v2020
        %v2022 = vpop.xlane.xlu0 %2021
        %v2023 = vadd.f32 %v1915, %v1917
        %2024 = vadd.xlane.f32.xlu0 %v2023
        %v2025 = vpop.xlane.xlu0 %2024
        %v2026 = vadd.f32 %v1919, %v1921
        %2027 = vadd.xlane.f32.xlu0 %v2026
        %v2028 = vpop.xlane.xlu0 %2027
        %v2029 = vadd.f32 %v1923, %v1925
        %2030 = vadd.xlane.f32.xlu0 %v2029
        %v2031 = vpop.xlane.xlu0 %2030
        %v2032 = vadd.f32 %v1927, %v1929
        %2033 = vadd.xlane.f32.xlu0 %v2032
        %v2034 = vpop.xlane.xlu0 %2033
        %v2035 = vadd.f32 %v1931, %v1933
        %2036 = vadd.xlane.f32.xlu0 %v2035
        %v2037 = vpop.xlane.xlu0 %2036
        %v2038 = vadd.f32 %v1935, %v1937
        %2039 = vadd.xlane.f32.xlu0 %v2038
        %v2040 = vpop.xlane.xlu0 %2039
        %v2041 = vadd.f32 %v1939, %v1941
        %2042 = vadd.xlane.f32.xlu0 %v2041
        %v2043 = vpop.xlane.xlu0 %2042
        %v2044 = vadd.f32 %v1943, %v1945
        %2045 = vadd.xlane.f32.xlu0 %v2044
        %v2046 = vpop.xlane.xlu0 %2045
        %v2047 = vadd.f32 %v1947, %v1949
        %2048 = vadd.xlane.f32.xlu0 %v2047
        %v2049 = vpop.xlane.xlu0 %2048
        %v2050 = vadd.f32 %v1951, %v1953
        %2051 = vadd.xlane.f32.xlu0 %v2050
        %v2052 = vpop.xlane.xlu0 %2051
        %v2053 = vadd.f32 %v1955, %v1957
        %2054 = vadd.xlane.f32.xlu0 %v2053
        %v2055 = vpop.xlane.xlu0 %2054
        %v2056 = vadd.f32 %v1959, %v1961
        %2057 = vadd.xlane.f32.xlu0 %v2056
        %v2058 = vpop.xlane.xlu0 %2057
        %v2059 = vadd.f32 %v1963, %v1965
        %2060 = vadd.xlane.f32.xlu0 %v2059
        %v2061 = vpop.xlane.xlu0 %2060
        %v2062 = vrcp.pop %v1968
        %v2063 = vmul.f32 %v1839, %v2062
        %v2064 = vmul.f32 %v1841, %v2062
        %v2065 = vrcp.pop %v1971
        %v2066 = vmul.f32 %v1843, %v2065
        %v2067 = vmul.f32 %v1845, %v2065
        %v2068 = vrcp.pop %v1974
        %v2069 = vmul.f32 %v1847, %v2068
        %v2070 = vmul.f32 %v1849, %v2068
        %v2071 = vrcp.pop %v1977
        %v2072 = vmul.f32 %v1851, %v2071
        %v2073 = vmul.f32 %v1853, %v2071
        %v2074 = vrcp.pop %v1980
        %v2075 = vmul.f32 %v1855, %v2074
        %v2076 = vmul.f32 %v1857, %v2074
        %v2077 = vrcp.pop %v1983
        %v2078 = vmul.f32 %v1859, %v2077
        %v2079 = vmul.f32 %v1861, %v2077
        %v2080 = vrcp.pop %v1986
        %v2081 = vmul.f32 %v1863, %v2080
        %v2082 = vmul.f32 %v1865, %v2080
        %v2083 = vrcp.pop %v1989
        %v2084 = vmul.f32 %v1867, %v2083
        %v2085 = vmul.f32 %v1869, %v2083
        %v2086 = vrcp.pop %v1992
        %v2087 = vmul.f32 %v1871, %v2086
        %v2088 = vmul.f32 %v1873, %v2086
        %v2089 = vrcp.pop %v1995
        %v2090 = vmul.f32 %v1875, %v2089
        %v2091 = vmul.f32 %v1877, %v2089
        %v2092 = vrcp.pop %v1998
        %v2093 = vmul.f32 %v1879, %v2092
        %v2094 = vmul.f32 %v1881, %v2092
        %v2095 = vrcp.pop %v2001
        %v2096 = vmul.f32 %v1883, %v2095
        %v2097 = vmul.f32 %v1885, %v2095
        %v2098 = vrcp.pop %v2004
        %v2099 = vmul.f32 %v1887, %v2098
        %v2100 = vmul.f32 %v1889, %v2098
        %v2101 = vrcp.pop %v2007
        %v2102 = vmul.f32 %v1891, %v2101
        %v2103 = vmul.f32 %v1893, %v2101
        %v2104 = vrcp.pop %v2010
        %v2105 = vmul.f32 %v1895, %v2104
        %v2106 = vmul.f32 %v1897, %v2104
        %v2107 = vrcp.pop %v2013
        %v2108 = vmul.f32 %v1899, %v2107
        %v2109 = vmul.f32 %v1901, %v2107
        %v2110 = vrcp.pop %v2016
        %v2111 = vmul.f32 %v1903, %v2110
        %v2112 = vmul.f32 %v1905, %v2110
        %v2113 = vrcp.pop %v2019
        %v2114 = vmul.f32 %v1907, %v2113
        %v2115 = vmul.f32 %v1909, %v2113
        %v2116 = vrcp.pop %v2022
        %v2117 = vmul.f32 %v1911, %v2116
        %v2118 = vmul.f32 %v1913, %v2116
        %v2119 = vrcp.pop %v2025
        %v2120 = vmul.f32 %v1915, %v2119
        %v2121 = vmul.f32 %v1917, %v2119
        %v2122 = vrcp.pop %v2028
        %v2123 = vmul.f32 %v1919, %v2122
        %v2124 = vmul.f32 %v1921, %v2122
        %v2125 = vrcp.pop %v2031
        %v2126 = vmul.f32 %v1923, %v2125
        %v2127 = vmul.f32 %v1925, %v2125
        %v2128 = vrcp.pop %v2034
        %v2129 = vmul.f32 %v1927, %v2128
        %v2130 = vmul.f32 %v1929, %v2128
        %v2131 = vrcp.pop %v2037
        %v2132 = vmul.f32 %v1931, %v2131
        %v2133 = vmul.f32 %v1933, %v2131
        %v2134 = vrcp.pop %v2040
        %v2135 = vmul.f32 %v1935, %v2134
        %v2136 = vmul.f32 %v1937, %v2134
        %v2137 = vrcp.pop %v2043
        %v2138 = vmul.f32 %v1939, %v2137
        %v2139 = vmul.f32 %v1941, %v2137
        %v2140 = vrcp.pop %v2046
        %v2141 = vmul.f32 %v1943, %v2140
        %v2142 = vmul.f32 %v1945, %v2140
        %v2143 = vrcp.pop %v2049
        %v2144 = vmul.f32 %v1947, %v2143
        %v2145 = vmul.f32 %v1949, %v2143
        %v2146 = vrcp.pop %v2052
        %v2147 = vmul.f32 %v1951, %v2146
        %v2148 = vmul.f32 %v1953, %v2146
        %v2149 = vrcp.pop %v2055
        %v2150 = vmul.f32 %v1955, %v2149
        %v2151 = vmul.f32 %v1957, %v2149
        %v2152 = vrcp.pop %v2058
        %v2153 = vmul.f32 %v1959, %v2152
        %v2154 = vmul.f32 %v1961, %v2152
        %v2155 = vrcp.pop %v2061
        %v2156 = vmul.f32 %v1963, %v2155
        %v2157 = vmul.f32 %v1965, %v2155
        %2158 = vst [vmem:[%s376] sm:$0xff] %v2063
        %2159 = vst [vmem:[%s376 + $0x8] sm:$0xff] %v2064
        %2160 = vst [vmem:[%s376 + $0x10] sm:$0xff] %v2066
        %2161 = vst [vmem:[%s376 + $0x18] sm:$0xff] %v2067
        %2162 = vst [vmem:[%s376 + $0x20] sm:$0xff] %v2069
        %2163 = vst [vmem:[%s376 + $0x28] sm:$0xff] %v2070
        %2164 = vst [vmem:[%s376 + $0x30] sm:$0xff] %v2072
        %2165 = vst [vmem:[%s376 + $0x38] sm:$0xff] %v2073
        %2166 = vst [vmem:[%s376 + $0x40] sm:$0xff] %v2075
        %2167 = vst [vmem:[%s376 + $0x48] sm:$0xff] %v2076
        %2168 = vst [vmem:[%s376 + $0x50] sm:$0xff] %v2078
        %2169 = vst [vmem:[%s376 + $0x58] sm:$0xff] %v2079
        %2170 = vst [vmem:[%s376 + $0x60] sm:$0xff] %v2081
        %2171 = vst [vmem:[%s376 + $0x68] sm:$0xff] %v2082
        %2172 = vst [vmem:[%s376 + $0x70] sm:$0xff] %v2084
        %2173 = vst [vmem:[%s376 + $0x78] sm:$0xff] %v2085
        %2174 = vst [vmem:[%s376 + $0x80] sm:$0xff] %v2087
        %2175 = vst [vmem:[%s376 + $0x88] sm:$0xff] %v2088
        %2176 = vst [vmem:[%s376 + $0x90] sm:$0xff] %v2090
        %2177 = vst [vmem:[%s376 + $0x98] sm:$0xff] %v2091
        %2178 = vst [vmem:[%s376 + $0xa0] sm:$0xff] %v2093
        %2179 = vst [vmem:[%s376 + $0xa8] sm:$0xff] %v2094
        %2180 = vst [vmem:[%s376 + $0xb0] sm:$0xff] %v2096
        %2181 = vst [vmem:[%s376 + $0xb8] sm:$0xff] %v2097
        %2182 = vst [vmem:[%s376 + $0xc0] sm:$0xff] %v2099
        %2183 = vst [vmem:[%s376 + $0xc8] sm:$0xff] %v2100
        %2184 = vst [vmem:[%s376 + $0xd0] sm:$0xff] %v2102
        %2185 = vst [vmem:[%s376 + $0xd8] sm:$0xff] %v2103
        %2186 = vst [vmem:[%s376 + $0xe0] sm:$0xff] %v2105
        %2187 = vst [vmem:[%s376 + $0xe8] sm:$0xff] %v2106
        %2188 = vst [vmem:[%s376 + $0xf0] sm:$0xff] %v2108
        %2189 = vst [vmem:[%s376 + $0xf8] sm:$0xff] %v2109
        %2190 = vst [vmem:[%s376 + $0x100] sm:$0xff] %v2111
        %2191 = vst [vmem:[%s376 + $0x108] sm:$0xff] %v2112
        %2192 = vst [vmem:[%s376 + $0x110] sm:$0xff] %v2114
        %2193 = vst [vmem:[%s376 + $0x118] sm:$0xff] %v2115
        %2194 = vst [vmem:[%s376 + $0x120] sm:$0xff] %v2117
        %2195 = vst [vmem:[%s376 + $0x128] sm:$0xff] %v2118
        %2196 = vst [vmem:[%s376 + $0x130] sm:$0xff] %v2120
        %2197 = vst [vmem:[%s376 + $0x138] sm:$0xff] %v2121
        %2198 = vst [vmem:[%s376 + $0x140] sm:$0xff] %v2123
        %2199 = vst [vmem:[%s376 + $0x148] sm:$0xff] %v2124
        %2200 = vst [vmem:[%s376 + $0x150] sm:$0xff] %v2126
        %2201 = vst [vmem:[%s376 + $0x158] sm:$0xff] %v2127
        %2202 = vst [vmem:[%s376 + $0x160] sm:$0xff] %v2129
        %2203 = vst [vmem:[%s376 + $0x168] sm:$0xff] %v2130
        %2204 = vst [vmem:[%s376 + $0x170] sm:$0xff] %v2132
        %2205 = vst [vmem:[%s376 + $0x178] sm:$0xff] %v2133
        %2206 = vst [vmem:[%s376 + $0x180] sm:$0xff] %v2135
        %2207 = vst [vmem:[%s376 + $0x188] sm:$0xff] %v2136
        %2208 = vst [vmem:[%s376 + $0x190] sm:$0xff] %v2138
        %2209 = vst [vmem:[%s376 + $0x198] sm:$0xff] %v2139
        %2210 = vst [vmem:[%s376 + $0x1a0] sm:$0xff] %v2141
        %2211 = vst [vmem:[%s376 + $0x1a8] sm:$0xff] %v2142
        %2212 = vst [vmem:[%s376 + $0x1b0] sm:$0xff] %v2144
        %2213 = vst [vmem:[%s376 + $0x1b8] sm:$0xff] %v2145
        %2214 = vst [vmem:[%s376 + $0x1c0] sm:$0xff] %v2147
        %2215 = vst [vmem:[%s376 + $0x1c8] sm:$0xff] %v2148
        %2216 = vst [vmem:[%s376 + $0x1d0] sm:$0xff] %v2150
        %2217 = vst [vmem:[%s376 + $0x1d8] sm:$0xff] %v2151
        %2218 = vst [vmem:[%s376 + $0x1e0] sm:$0xff] %v2153
        %2219 = vst [vmem:[%s376 + $0x1e8] sm:$0xff] %v2154
        %2220 = vst [vmem:[%s376 + $0x1f0] sm:$0xff] %v2156
        %2221 = vst [vmem:[%s376 + $0x1f8] sm:$0xff] %v2157
        %2222 = vmatprep.subr.mxu0 0.0
        %2223 = vmatpush1.msra.mxu0 %v1071
        %2224 = vmatprep.subr.mxu0 0.0
        %2225 = vmatpush1.msra.mxu0 %v1076
        %2226 = vmatprep.subr.mxu0 0.0
        %2227 = vmatpush1.msra.mxu0 %v1081
        %2228 = vmatprep.subr.mxu0 0.0
        %2229 = vmatpush1.msra.mxu0 %v1086
        %2230 = vmatprep.subr.mxu0 0.0
        %2231 = vmatpush1.msra.mxu0 %v1091
        %2232 = vmatprep.subr.mxu0 0.0
        %2233 = vmatpush1.msra.mxu0 %v1096
        %2234 = vmatprep.subr.mxu0 0.0
        %2235 = vmatpush1.msra.mxu0 %v1101
        %2236 = vmatprep.subr.mxu0 0.0
        %2237 = vmatpush1.msra.mxu0 %v1106
        %2238 = vmatprep.subr.mxu0 0.0
        %2239 = vmatpush1.msra.mxu0 %v1111
        %2240 = vmatprep.subr.mxu0 0.0
        %2241 = vmatpush1.msra.mxu0 %v1116
        %2242 = vmatprep.subr.mxu0 0.0
        %2243 = vmatpush1.msra.mxu0 %v1121
        %2244 = vmatprep.subr.mxu0 0.0
        %2245 = vmatpush1.msra.mxu0 %v1126
        %2246 = vmatprep.subr.mxu0 0.0
        %2247 = vmatpush1.msra.mxu0 %v1131
        %2248 = vmatprep.subr.mxu0 0.0
        %2249 = vmatpush1.msra.mxu0 %v1136
        %2250 = vmatprep.subr.mxu0 0.0
        %2251 = vmatpush1.msra.mxu0 %v1141
        %2252 = vmatprep.subr.mxu0 0.0
        %2253 = vmatpush1.msra.mxu0 %v1146
        %2254 = vmatprep.subr.mxu0 0.0
        %2255 = vmatpush1.msra.mxu0 %v1151
        %2256 = vmatprep.subr.mxu0 0.0
        %2257 = vmatpush1.msra.mxu0 %v1156
        %2258 = vmatprep.subr.mxu0 0.0
        %2259 = vmatpush1.msra.mxu0 %v1161
        %2260 = vmatprep.subr.mxu0 0.0
        %2261 = vmatpush1.msra.mxu0 %v1166
        %2262 = vmatprep.subr.mxu0 0.0
        %2263 = vmatpush1.msra.mxu0 %v1171
        %2264 = vmatprep.subr.mxu0 0.0
        %2265 = vmatpush1.msra.mxu0 %v1176
        %2266 = vmatprep.subr.mxu0 0.0
        %2267 = vmatpush1.msra.mxu0 %v1181
        %2268 = vmatprep.subr.mxu0 0.0
        %2269 = vmatpush1.msra.mxu0 %v1186
        %2270 = vmatprep.subr.mxu0 0.0
        %2271 = vmatpush1.msra.mxu0 %v1191
        %2272 = vmatprep.subr.mxu0 0.0
        %2273 = vmatpush1.msra.mxu0 %v1196
        %2274 = vmatprep.subr.mxu0 0.0
        %2275 = vmatpush1.msra.mxu0 %v1201
        %2276 = vmatprep.subr.mxu0 0.0
        %2277 = vmatpush1.msra.mxu0 %v1206
        %2278 = vmatprep.subr.mxu0 0.0
        %2279 = vmatpush1.msra.mxu0 %v1211
        %2280 = vmatprep.subr.mxu0 0.0
        %2281 = vmatpush1.msra.mxu0 %v1216
        %2282 = vmatprep.subr.mxu0 0.0
        %2283 = vmatpush1.msra.mxu0 %v1221
        %2284 = vmatprep.subr.mxu0 0.0
        %2285 = vmatpush1.msra.mxu0 %v1226
        %2286 = vmatprep.mubr.f32.mxu0 %v2064
        %2287 = vmatmul.mubr.f32.gmra.mrb[0].mxu0 %v2063
        %v2288 = vpop.f32.mrb[0].mxu0
        %v2289 = vadd.f32 0.0, %v2288
        %v2290 = vpop.f32.mrb[0].mxu0
        %2291 = vmatprep.mubr.f32.mxu0 %v2067
        %2292 = vmatmul.mubr.f32.gmra.mrb[0].mxu0 %v2066
        %v2293 = vpop.f32.mrb[0].mxu0
        %v2294 = vadd.f32 0.0, %v2293
        %v2295 = vpop.f32.mrb[0].mxu0
        %2296 = vmatprep.mubr.f32.mxu0 %v2070
        %2297 = vmatmul.mubr.f32.gmra.mrb[0].mxu0 %v2069
        %v2298 = vpop.f32.mrb[0].mxu0
        %v2299 = vadd.f32 0.0, %v2298
        %v2300 = vpop.f32.mrb[0].mxu0
        %2301 = vmatprep.mubr.f32.mxu0 %v2073
        %2302 = vmatmul.mubr.f32.gmra.mrb[0].mxu0 %v2072
        %v2303 = vpop.f32.mrb[0].mxu0
        %v2304 = vadd.f32 0.0, %v2303
        %v2305 = vpop.f32.mrb[0].mxu0
        %2306 = vmatprep.mubr.f32.mxu0 %v2076
        %2307 = vmatmul.mubr.f32.gmra.mrb[0].mxu0 %v2075
        %v2308 = vpop.f32.mrb[0].mxu0
        %v2309 = vadd.f32 0.0, %v2308
        %v2310 = vpop.f32.mrb[0].mxu0
        %2311 = vmatprep.mubr.f32.mxu0 %v2079
        %2312 = vmatmul.mubr.f32.gmra.mrb[0].mxu0 %v2078
        %v2313 = vpop.f32.mrb[0].mxu0
        %v2314 = vadd.f32 0.0, %v2313
        %v2315 = vpop.f32.mrb[0].mxu0
        %2316 = vmatprep.mubr.f32.mxu0 %v2082
        %2317 = vmatmul.mubr.f32.gmra.mrb[0].mxu0 %v2081
        %v2318 = vpop.f32.mrb[0].mxu0
        %v2319 = vadd.f32 0.0, %v2318
        %v2320 = vpop.f32.mrb[0].mxu0
        %2321 = vmatprep.mubr.f32.mxu0 %v2085
        %2322 = vmatmul.mubr.f32.gmra.mrb[0].mxu0 %v2084
        %v2323 = vpop.f32.mrb[0].mxu0
        %v2324 = vadd.f32 0.0, %v2323
        %v2325 = vpop.f32.mrb[0].mxu0
        %2326 = vmatprep.mubr.f32.mxu0 %v2088
        %2327 = vmatmul.mubr.f32.gmra.mrb[0].mxu0 %v2087
        %v2328 = vpop.f32.mrb[0].mxu0
        %v2329 = vadd.f32 0.0, %v2328
        %v2330 = vpop.f32.mrb[0].mxu0
        %2331 = vmatprep.mubr.f32.mxu0 %v2091
        %2332 = vmatmul.mubr.f32.gmra.mrb[0].mxu0 %v2090
        %v2333 = vpop.f32.mrb[0].mxu0
        %v2334 = vadd.f32 0.0, %v2333
        %v2335 = vpop.f32.mrb[0].mxu0
        %2336 = vmatprep.mubr.f32.mxu0 %v2094
        %2337 = vmatmul.mubr.f32.gmra.mrb[0].mxu0 %v2093
        %v2338 = vpop.f32.mrb[0].mxu0
        %v2339 = vadd.f32 0.0, %v2338
        %v2340 = vpop.f32.mrb[0].mxu0
        %2341 = vmatprep.mubr.f32.mxu0 %v2097
        %2342 = vmatmul.mubr.f32.gmra.mrb[0].mxu0 %v2096
        %v2343 = vpop.f32.mrb[0].mxu0
        %v2344 = vadd.f32 0.0, %v2343
        %v2345 = vpop.f32.mrb[0].mxu0
        %2346 = vmatprep.mubr.f32.mxu0 %v2100
        %2347 = vmatmul.mubr.f32.gmra.mrb[0].mxu0 %v2099
        %v2348 = vpop.f32.mrb[0].mxu0
        %v2349 = vadd.f32 0.0, %v2348
        %v2350 = vpop.f32.mrb[0].mxu0
        %2351 = vmatprep.mubr.f32.mxu0 %v2103
        %2352 = vmatmul.mubr.f32.gmra.mrb[0].mxu0 %v2102
        %v2353 = vpop.f32.mrb[0].mxu0
        %v2354 = vadd.f32 0.0, %v2353
        %v2355 = vpop.f32.mrb[0].mxu0
        %2356 = vmatprep.mubr.f32.mxu0 %v2106
        %2357 = vmatmul.mubr.f32.gmra.mrb[0].mxu0 %v2105
        %v2358 = vpop.f32.mrb[0].mxu0
        %v2359 = vadd.f32 0.0, %v2358
        %v2360 = vpop.f32.mrb[0].mxu0
        %2361 = vmatprep.mubr.f32.mxu0 %v2109
        %2362 = vmatmul.mubr.f32.gmra.mrb[0].mxu0 %v2108
        %v2363 = vpop.f32.mrb[0].mxu0
        %v2364 = vadd.f32 0.0, %v2363
        %v2365 = vpop.f32.mrb[0].mxu0
        %2366 = vmatprep.mubr.f32.mxu0 %v2112
        %2367 = vmatmul.mubr.f32.gmra.mrb[0].mxu0 %v2111
        %v2368 = vpop.f32.mrb[0].mxu0
        %v2369 = vadd.f32 0.0, %v2368
        %v2370 = vpop.f32.mrb[0].mxu0
        %2371 = vmatprep.mubr.f32.mxu0 %v2115
        %2372 = vmatmul.mubr.f32.gmra.mrb[0].mxu0 %v2114
        %v2373 = vpop.f32.mrb[0].mxu0
        %v2374 = vadd.f32 0.0, %v2373
        %v2375 = vpop.f32.mrb[0].mxu0
        %2376 = vmatprep.mubr.f32.mxu0 %v2118
        %2377 = vmatmul.mubr.f32.gmra.mrb[0].mxu0 %v2117
        %v2378 = vpop.f32.mrb[0].mxu0
        %v2379 = vadd.f32 0.0, %v2378
        %v2380 = vpop.f32.mrb[0].mxu0
        %2381 = vmatprep.mubr.f32.mxu0 %v2121
        %2382 = vmatmul.mubr.f32.gmra.mrb[0].mxu0 %v2120
        %v2383 = vpop.f32.mrb[0].mxu0
        %v2384 = vadd.f32 0.0, %v2383
        %v2385 = vpop.f32.mrb[0].mxu0
        %2386 = vmatprep.mubr.f32.mxu0 %v2124
        %2387 = vmatmul.mubr.f32.gmra.mrb[0].mxu0 %v2123
        %v2388 = vpop.f32.mrb[0].mxu0
        %v2389 = vadd.f32 0.0, %v2388
        %v2390 = vpop.f32.mrb[0].mxu0
        %2391 = vmatprep.mubr.f32.mxu0 %v2127
        %2392 = vmatmul.mubr.f32.gmra.mrb[0].mxu0 %v2126
        %v2393 = vpop.f32.mrb[0].mxu0
        %v2394 = vadd.f32 0.0, %v2393
        %v2395 = vpop.f32.mrb[0].mxu0
        %2396 = vmatprep.mubr.f32.mxu0 %v2130
        %2397 = vmatmul.mubr.f32.gmra.mrb[0].mxu0 %v2129
        %v2398 = vpop.f32.mrb[0].mxu0
        %v2399 = vadd.f32 0.0, %v2398
        %v2400 = vpop.f32.mrb[0].mxu0
        %2401 = vmatprep.mubr.f32.mxu0 %v2133
        %2402 = vmatmul.mubr.f32.gmra.mrb[0].mxu0 %v2132
        %v2403 = vpop.f32.mrb[0].mxu0
        %v2404 = vadd.f32 0.0, %v2403
        %v2405 = vpop.f32.mrb[0].mxu0
        %2406 = vmatprep.mubr.f32.mxu0 %v2136
        %2407 = vmatmul.mubr.f32.gmra.mrb[0].mxu0 %v2135
        %v2408 = vpop.f32.mrb[0].mxu0
        %v2409 = vadd.f32 0.0, %v2408
        %v2410 = vpop.f32.mrb[0].mxu0
        %2411 = vmatprep.mubr.f32.mxu0 %v2139
        %2412 = vmatmul.mubr.f32.gmra.mrb[0].mxu0 %v2138
        %v2413 = vpop.f32.mrb[0].mxu0
        %v2414 = vadd.f32 0.0, %v2413
        %v2415 = vpop.f32.mrb[0].mxu0
        %2416 = vmatprep.mubr.f32.mxu0 %v2142
        %2417 = vmatmul.mubr.f32.gmra.mrb[0].mxu0 %v2141
        %v2418 = vpop.f32.mrb[0].mxu0
        %v2419 = vadd.f32 0.0, %v2418
        %v2420 = vpop.f32.mrb[0].mxu0
        %2421 = vmatprep.mubr.f32.mxu0 %v2145
        %2422 = vmatmul.mubr.f32.gmra.mrb[0].mxu0 %v2144
        %v2423 = vpop.f32.mrb[0].mxu0
        %v2424 = vadd.f32 0.0, %v2423
        %v2425 = vpop.f32.mrb[0].mxu0
        %2426 = vmatprep.mubr.f32.mxu0 %v2148
        %2427 = vmatmul.mubr.f32.gmra.mrb[0].mxu0 %v2147
        %v2428 = vpop.f32.mrb[0].mxu0
        %v2429 = vadd.f32 0.0, %v2428
        %v2430 = vpop.f32.mrb[0].mxu0
        %2431 = vmatprep.mubr.f32.mxu0 %v2151
        %2432 = vmatmul.mubr.f32.gmra.mrb[0].mxu0 %v2150
        %v2433 = vpop.f32.mrb[0].mxu0
        %v2434 = vadd.f32 0.0, %v2433
        %v2435 = vpop.f32.mrb[0].mxu0
        %2436 = vmatprep.mubr.f32.mxu0 %v2154
        %2437 = vmatmul.mubr.f32.gmra.mrb[0].mxu0 %v2153
        %v2438 = vpop.f32.mrb[0].mxu0
        %v2439 = vadd.f32 0.0, %v2438
        %v2440 = vpop.f32.mrb[0].mxu0
        %2441 = vmatprep.mubr.f32.mxu0 %v2157
        %2442 = vmatmul.mubr.f32.gmra.mrb[0].mxu0 %v2156
        %v2443 = vpop.f32.mrb[0].mxu0
        %v2444 = vadd.f32 0.0, %v2443
        %v2445 = vpop.f32.mrb[0].mxu0
        %2446 = vdwg.mxu0
        %v2447 = vsel %vm435, %v2289, -inf
        %2448 = vmax.xlane.f32.xlu0 %v2447
        %v2449 = vpop.xlane.xlu0 %2448
        %v2450 = vsel %vm435, %v2294, -inf
        %2451 = vmax.xlane.f32.xlu0 %v2450
        %v2452 = vpop.xlane.xlu0 %2451
        %v2453 = vsel %vm435, %v2299, -inf
        %2454 = vmax.xlane.f32.xlu0 %v2453
        %v2455 = vpop.xlane.xlu0 %2454
        %v2456 = vsel %vm435, %v2304, -inf
        %2457 = vmax.xlane.f32.xlu0 %v2456
        %v2458 = vpop.xlane.xlu0 %2457
        %v2459 = vsel %vm435, %v2309, -inf
        %2460 = vmax.xlane.f32.xlu0 %v2459
        %v2461 = vpop.xlane.xlu0 %2460
        %v2462 = vsel %vm435, %v2314, -inf
        %2463 = vmax.xlane.f32.xlu0 %v2462
        %v2464 = vpop.xlane.xlu0 %2463
        %v2465 = vsel %vm435, %v2319, -inf
        %2466 = vmax.xlane.f32.xlu0 %v2465
        %v2467 = vpop.xlane.xlu0 %2466
        %v2468 = vsel %vm435, %v2324, -inf
        %2469 = vmax.xlane.f32.xlu0 %v2468
        %v2470 = vpop.xlane.xlu0 %2469
        %v2471 = vsel %vm435, %v2329, -inf
        %2472 = vmax.xlane.f32.xlu0 %v2471
        %v2473 = vpop.xlane.xlu0 %2472
        %v2474 = vsel %vm435, %v2334, -inf
        %2475 = vmax.xlane.f32.xlu0 %v2474
        %v2476 = vpop.xlane.xlu0 %2475
        %v2477 = vsel %vm435, %v2339, -inf
        %2478 = vmax.xlane.f32.xlu0 %v2477
        %v2479 = vpop.xlane.xlu0 %2478
        %v2480 = vsel %vm435, %v2344, -inf
        %2481 = vmax.xlane.f32.xlu0 %v2480
        %v2482 = vpop.xlane.xlu0 %2481
        %v2483 = vsel %vm435, %v2349, -inf
        %2484 = vmax.xlane.f32.xlu0 %v2483
        %v2485 = vpop.xlane.xlu0 %2484
        %v2486 = vsel %vm435, %v2354, -inf
        %2487 = vmax.xlane.f32.xlu0 %v2486
        %v2488 = vpop.xlane.xlu0 %2487
        %v2489 = vsel %vm435, %v2359, -inf
        %2490 = vmax.xlane.f32.xlu0 %v2489
        %v2491 = vpop.xlane.xlu0 %2490
        %v2492 = vsel %vm435, %v2364, -inf
        %2493 = vmax.xlane.f32.xlu0 %v2492
        %v2494 = vpop.xlane.xlu0 %2493
        %v2495 = vsel %vm435, %v2369, -inf
        %2496 = vmax.xlane.f32.xlu0 %v2495
        %v2497 = vpop.xlane.xlu0 %2496
        %v2498 = vsel %vm435, %v2374, -inf
        %2499 = vmax.xlane.f32.xlu0 %v2498
        %v2500 = vpop.xlane.xlu0 %2499
        %v2501 = vsel %vm435, %v2379, -inf
        %2502 = vmax.xlane.f32.xlu0 %v2501
        %v2503 = vpop.xlane.xlu0 %2502
        %v2504 = vsel %vm435, %v2384, -inf
        %2505 = vmax.xlane.f32.xlu0 %v2504
        %v2506 = vpop.xlane.xlu0 %2505
        %v2507 = vsel %vm435, %v2389, -inf
        %2508 = vmax.xlane.f32.xlu0 %v2507
        %v2509 = vpop.xlane.xlu0 %2508
        %v2510 = vsel %vm435, %v2394, -inf
        %2511 = vmax.xlane.f32.xlu0 %v2510
        %v2512 = vpop.xlane.xlu0 %2511
        %v2513 = vsel %vm435, %v2399, -inf
        %2514 = vmax.xlane.f32.xlu0 %v2513
        %v2515 = vpop.xlane.xlu0 %2514
        %v2516 = vsel %vm435, %v2404, -inf
        %2517 = vmax.xlane.f32.xlu0 %v2516
        %v2518 = vpop.xlane.xlu0 %2517
        %v2519 = vsel %vm435, %v2409, -inf
        %2520 = vmax.xlane.f32.xlu0 %v2519
        %v2521 = vpop.xlane.xlu0 %2520
        %v2522 = vsel %vm435, %v2414, -inf
        %2523 = vmax.xlane.f32.xlu0 %v2522
        %v2524 = vpop.xlane.xlu0 %2523
        %v2525 = vsel %vm435, %v2419, -inf
        %2526 = vmax.xlane.f32.xlu0 %v2525
        %v2527 = vpop.xlane.xlu0 %2526
        %v2528 = vsel %vm435, %v2424, -inf
        %2529 = vmax.xlane.f32.xlu0 %v2528
        %v2530 = vpop.xlane.xlu0 %2529
        %v2531 = vsel %vm435, %v2429, -inf
        %2532 = vmax.xlane.f32.xlu0 %v2531
        %v2533 = vpop.xlane.xlu0 %2532
        %v2534 = vsel %vm435, %v2434, -inf
        %2535 = vmax.xlane.f32.xlu0 %v2534
        %v2536 = vpop.xlane.xlu0 %2535
        %v2537 = vsel %vm435, %v2439, -inf
        %2538 = vmax.xlane.f32.xlu0 %v2537
        %v2539 = vpop.xlane.xlu0 %2538
        %v2540 = vsel %vm435, %v2444, -inf
        %2541 = vmax.xlane.f32.xlu0 %v2540
        %v2542 = vpop.xlane.xlu0 %2541
        %s2543 = sld [smem:[#allocation2]]
        %v2544 = vstv %s2543
        %v2545 = vmul.f32 %v2544, %v2449
        %v2546 = vmul.f32 %v2544, %v2452
        %v2547 = vmul.f32 %v2544, %v2455
        %v2548 = vmul.f32 %v2544, %v2458
        %v2549 = vmul.f32 %v2544, %v2461
        %v2550 = vmul.f32 %v2544, %v2464
        %v2551 = vmul.f32 %v2544, %v2467
        %v2552 = vmul.f32 %v2544, %v2470
        %v2553 = vmul.f32 %v2544, %v2473
        %v2554 = vmul.f32 %v2544, %v2476
        %v2555 = vmul.f32 %v2544, %v2479
        %v2556 = vmul.f32 %v2544, %v2482
        %v2557 = vmul.f32 %v2544, %v2485
        %v2558 = vmul.f32 %v2544, %v2488
        %v2559 = vmul.f32 %v2544, %v2491
        %v2560 = vmul.f32 %v2544, %v2494
        %v2561 = vmul.f32 %v2544, %v2497
        %v2562 = vmul.f32 %v2544, %v2500
        %v2563 = vmul.f32 %v2544, %v2503
        %v2564 = vmul.f32 %v2544, %v2506
        %v2565 = vmul.f32 %v2544, %v2509
        %v2566 = vmul.f32 %v2544, %v2512
        %v2567 = vmul.f32 %v2544, %v2515
        %v2568 = vmul.f32 %v2544, %v2518
        %v2569 = vmul.f32 %v2544, %v2521
        %v2570 = vmul.f32 %v2544, %v2524
        %v2571 = vmul.f32 %v2544, %v2527
        %v2572 = vmul.f32 %v2544, %v2530
        %v2573 = vmul.f32 %v2544, %v2533
        %v2574 = vmul.f32 %v2544, %v2536
        %v2575 = vmul.f32 %v2544, %v2539
        %v2576 = vmul.f32 %v2544, %v2542
        %v2577 = vld [vmem:[%s386] sm:$0xff]
        %v2578 = vld [vmem:[%s386 + $0x8] sm:$0xff]
        %v2579 = vld [vmem:[%s386 + $0x10] sm:$0xff]
        %v2580 = vld [vmem:[%s386 + $0x18] sm:$0xff]
        %v2581 = vld [vmem:[%s386 + $0x20] sm:$0xff]
        %v2582 = vld [vmem:[%s386 + $0x28] sm:$0xff]
        %v2583 = vld [vmem:[%s386 + $0x30] sm:$0xff]
        %v2584 = vld [vmem:[%s386 + $0x38] sm:$0xff]
        %v2585 = vld [vmem:[%s386 + $0x40] sm:$0xff]
        %v2586 = vld [vmem:[%s386 + $0x48] sm:$0xff]
        %v2587 = vld [vmem:[%s386 + $0x50] sm:$0xff]
        %v2588 = vld [vmem:[%s386 + $0x58] sm:$0xff]
        %v2589 = vld [vmem:[%s386 + $0x60] sm:$0xff]
        %v2590 = vld [vmem:[%s386 + $0x68] sm:$0xff]
        %v2591 = vld [vmem:[%s386 + $0x70] sm:$0xff]
        %v2592 = vld [vmem:[%s386 + $0x78] sm:$0xff]
        %v2593 = vld [vmem:[%s386 + $0x80] sm:$0xff]
        %v2594 = vld [vmem:[%s386 + $0x88] sm:$0xff]
        %v2595 = vld [vmem:[%s386 + $0x90] sm:$0xff]
        %v2596 = vld [vmem:[%s386 + $0x98] sm:$0xff]
        %v2597 = vld [vmem:[%s386 + $0xa0] sm:$0xff]
        %v2598 = vld [vmem:[%s386 + $0xa8] sm:$0xff]
        %v2599 = vld [vmem:[%s386 + $0xb0] sm:$0xff]
        %v2600 = vld [vmem:[%s386 + $0xb8] sm:$0xff]
        %v2601 = vld [vmem:[%s386 + $0xc0] sm:$0xff]
        %v2602 = vld [vmem:[%s386 + $0xc8] sm:$0xff]
        %v2603 = vld [vmem:[%s386 + $0xd0] sm:$0xff]
        %v2604 = vld [vmem:[%s386 + $0xd8] sm:$0xff]
        %v2605 = vld [vmem:[%s386 + $0xe0] sm:$0xff]
        %v2606 = vld [vmem:[%s386 + $0xe8] sm:$0xff]
        %v2607 = vld [vmem:[%s386 + $0xf0] sm:$0xff]
        %v2608 = vld [vmem:[%s386 + $0xf8] sm:$0xff]
        %v2609 = vadd.f32 %v2545, %v2577
        %v2610 = vadd.f32 %v2546, %v2578
        %v2611 = vadd.f32 %v2547, %v2579
        %v2612 = vadd.f32 %v2548, %v2580
        %v2613 = vadd.f32 %v2549, %v2581
        %v2614 = vadd.f32 %v2550, %v2582
        %v2615 = vadd.f32 %v2551, %v2583
        %v2616 = vadd.f32 %v2552, %v2584
        %v2617 = vadd.f32 %v2553, %v2585
        %v2618 = vadd.f32 %v2554, %v2586
        %v2619 = vadd.f32 %v2555, %v2587
        %v2620 = vadd.f32 %v2556, %v2588
        %v2621 = vadd.f32 %v2557, %v2589
        %v2622 = vadd.f32 %v2558, %v2590
        %v2623 = vadd.f32 %v2559, %v2591
        %v2624 = vadd.f32 %v2560, %v2592
        %v2625 = vadd.f32 %v2561, %v2593
        %v2626 = vadd.f32 %v2562, %v2594
        %v2627 = vadd.f32 %v2563, %v2595
        %v2628 = vadd.f32 %v2564, %v2596
        %v2629 = vadd.f32 %v2565, %v2597
        %v2630 = vadd.f32 %v2566, %v2598
        %v2631 = vadd.f32 %v2567, %v2599
        %v2632 = vadd.f32 %v2568, %v2600
        %v2633 = vadd.f32 %v2569, %v2601
        %v2634 = vadd.f32 %v2570, %v2602
        %v2635 = vadd.f32 %v2571, %v2603
        %v2636 = vadd.f32 %v2572, %v2604
        %v2637 = vadd.f32 %v2573, %v2605
        %v2638 = vadd.f32 %v2574, %v2606
        %v2639 = vadd.f32 %v2575, %v2607
        %v2640 = vadd.f32 %v2576, %v2608
        %v2641 = vmin.f32 %v2609, 0.0
        %v2642 = vmin.f32 %v2610, 0.0
        %v2643 = vmin.f32 %v2611, 0.0
        %v2644 = vmin.f32 %v2612, 0.0
        %v2645 = vmin.f32 %v2613, 0.0
        %v2646 = vmin.f32 %v2614, 0.0
        %v2647 = vmin.f32 %v2615, 0.0
        %v2648 = vmin.f32 %v2616, 0.0
        %v2649 = vmin.f32 %v2617, 0.0
        %v2650 = vmin.f32 %v2618, 0.0
        %v2651 = vmin.f32 %v2619, 0.0
        %v2652 = vmin.f32 %v2620, 0.0
        %v2653 = vmin.f32 %v2621, 0.0
        %v2654 = vmin.f32 %v2622, 0.0
        %v2655 = vmin.f32 %v2623, 0.0
        %v2656 = vmin.f32 %v2624, 0.0
        %v2657 = vmin.f32 %v2625, 0.0
        %v2658 = vmin.f32 %v2626, 0.0
        %v2659 = vmin.f32 %v2627, 0.0
        %v2660 = vmin.f32 %v2628, 0.0
        %v2661 = vmin.f32 %v2629, 0.0
        %v2662 = vmin.f32 %v2630, 0.0
        %v2663 = vmin.f32 %v2631, 0.0
        %v2664 = vmin.f32 %v2632, 0.0
        %v2665 = vmin.f32 %v2633, 0.0
        %v2666 = vmin.f32 %v2634, 0.0
        %v2667 = vmin.f32 %v2635, 0.0
        %v2668 = vmin.f32 %v2636, 0.0
        %v2669 = vmin.f32 %v2637, 0.0
        %v2670 = vmin.f32 %v2638, 0.0
        %v2671 = vmin.f32 %v2639, 0.0
        %v2672 = vmin.f32 %v2640, 0.0
        %v2673 = vand.u32 2147483647, %v2609
        %v2674 = vand.u32 2147483647, %v2610
        %v2675 = vand.u32 2147483647, %v2611
        %v2676 = vand.u32 2147483647, %v2612
        %v2677 = vand.u32 2147483647, %v2613
        %v2678 = vand.u32 2147483647, %v2614
        %v2679 = vand.u32 2147483647, %v2615
        %v2680 = vand.u32 2147483647, %v2616
        %v2681 = vand.u32 2147483647, %v2617
        %v2682 = vand.u32 2147483647, %v2618
        %v2683 = vand.u32 2147483647, %v2619
        %v2684 = vand.u32 2147483647, %v2620
        %v2685 = vand.u32 2147483647, %v2621
        %v2686 = vand.u32 2147483647, %v2622
        %v2687 = vand.u32 2147483647, %v2623
        %v2688 = vand.u32 2147483647, %v2624
        %v2689 = vand.u32 2147483647, %v2625
        %v2690 = vand.u32 2147483647, %v2626
        %v2691 = vand.u32 2147483647, %v2627
        %v2692 = vand.u32 2147483647, %v2628
        %v2693 = vand.u32 2147483647, %v2629
        %v2694 = vand.u32 2147483647, %v2630
        %v2695 = vand.u32 2147483647, %v2631
        %v2696 = vand.u32 2147483647, %v2632
        %v2697 = vand.u32 2147483647, %v2633
        %v2698 = vand.u32 2147483647, %v2634
        %v2699 = vand.u32 2147483647, %v2635
        %v2700 = vand.u32 2147483647, %v2636
        %v2701 = vand.u32 2147483647, %v2637
        %v2702 = vand.u32 2147483647, %v2638
        %v2703 = vand.u32 2147483647, %v2639
        %v2704 = vand.u32 2147483647, %v2640
        %v2705 = vsub.f32 0.0, %v2673
        %v2706 = vsub.f32 0.0, %v2674
        %v2707 = vsub.f32 0.0, %v2675
        %v2708 = vsub.f32 0.0, %v2676
        %v2709 = vsub.f32 0.0, %v2677
        %v2710 = vsub.f32 0.0, %v2678
        %v2711 = vsub.f32 0.0, %v2679
        %v2712 = vsub.f32 0.0, %v2680
        %v2713 = vsub.f32 0.0, %v2681
        %v2714 = vsub.f32 0.0, %v2682
        %v2715 = vsub.f32 0.0, %v2683
        %v2716 = vsub.f32 0.0, %v2684
        %v2717 = vsub.f32 0.0, %v2685
        %v2718 = vsub.f32 0.0, %v2686
        %v2719 = vsub.f32 0.0, %v2687
        %v2720 = vsub.f32 0.0, %v2688
        %v2721 = vsub.f32 0.0, %v2689
        %v2722 = vsub.f32 0.0, %v2690
        %v2723 = vsub.f32 0.0, %v2691
        %v2724 = vsub.f32 0.0, %v2692
        %v2725 = vsub.f32 0.0, %v2693
        %v2726 = vsub.f32 0.0, %v2694
        %v2727 = vsub.f32 0.0, %v2695
        %v2728 = vsub.f32 0.0, %v2696
        %v2729 = vsub.f32 0.0, %v2697
        %v2730 = vsub.f32 0.0, %v2698
        %v2731 = vsub.f32 0.0, %v2699
        %v2732 = vsub.f32 0.0, %v2700
        %v2733 = vsub.f32 0.0, %v2701
        %v2734 = vsub.f32 0.0, %v2702
        %v2735 = vsub.f32 0.0, %v2703
        %v2736 = vsub.f32 0.0, %v2704
        %v2737 = vmul.f32 %v2705, 1.442695
        %v2738 = vpow.pop %v2737
        %v2739 = vmul.f32 %v2706, 1.442695
        %v2740 = vpow.pop %v2739
        %v2741 = vmul.f32 %v2707, 1.442695
        %v2742 = vpow.pop %v2741
        %v2743 = vmul.f32 %v2708, 1.442695
        %v2744 = vpow.pop %v2743
        %v2745 = vmul.f32 %v2709, 1.442695
        %v2746 = vpow.pop %v2745
        %v2747 = vmul.f32 %v2710, 1.442695
        %v2748 = vpow.pop %v2747
        %v2749 = vmul.f32 %v2711, 1.442695
        %v2750 = vpow.pop %v2749
        %v2751 = vmul.f32 %v2712, 1.442695
        %v2752 = vpow.pop %v2751
        %v2753 = vmul.f32 %v2713, 1.442695
        %v2754 = vpow.pop %v2753
        %v2755 = vmul.f32 %v2714, 1.442695
        %v2756 = vpow.pop %v2755
        %v2757 = vmul.f32 %v2715, 1.442695
        %v2758 = vpow.pop %v2757
        %v2759 = vmul.f32 %v2716, 1.442695
        %v2760 = vpow.pop %v2759
        %v2761 = vmul.f32 %v2717, 1.442695
        %v2762 = vpow.pop %v2761
        %v2763 = vmul.f32 %v2718, 1.442695
        %v2764 = vpow.pop %v2763
        %v2765 = vmul.f32 %v2719, 1.442695
        %v2766 = vpow.pop %v2765
        %v2767 = vmul.f32 %v2720, 1.442695
        %v2768 = vpow.pop %v2767
        %v2769 = vmul.f32 %v2721, 1.442695
        %v2770 = vpow.pop %v2769
        %v2771 = vmul.f32 %v2722, 1.442695
        %v2772 = vpow.pop %v2771
        %v2773 = vmul.f32 %v2723, 1.442695
        %v2774 = vpow.pop %v2773
        %v2775 = vmul.f32 %v2724, 1.442695
        %v2776 = vpow.pop %v2775
        %v2777 = vmul.f32 %v2725, 1.442695
        %v2778 = vpow.pop %v2777
        %v2779 = vmul.f32 %v2726, 1.442695
        %v2780 = vpow.pop %v2779
        %v2781 = vmul.f32 %v2727, 1.442695
        %v2782 = vpow.pop %v2781
        %v2783 = vmul.f32 %v2728, 1.442695
        %v2784 = vpow.pop %v2783
        %v2785 = vmul.f32 %v2729, 1.442695
        %v2786 = vpow.pop %v2785
        %v2787 = vmul.f32 %v2730, 1.442695
        %v2788 = vpow.pop %v2787
        %v2789 = vmul.f32 %v2731, 1.442695
        %v2790 = vpow.pop %v2789
        %v2791 = vmul.f32 %v2732, 1.442695
        %v2792 = vpow.pop %v2791
        %v2793 = vmul.f32 %v2733, 1.442695
        %v2794 = vpow.pop %v2793
        %v2795 = vmul.f32 %v2734, 1.442695
        %v2796 = vpow.pop %v2795
        %v2797 = vmul.f32 %v2735, 1.442695
        %v2798 = vpow.pop %v2797
        %v2799 = vmul.f32 %v2736, 1.442695
        %v2800 = vpow.pop %v2799
        %v2801 = vadd.f32 %v2738, 1.0
        %v2802 = vadd.f32 %v2740, 1.0
        %v2803 = vadd.f32 %v2742, 1.0
        %v2804 = vadd.f32 %v2744, 1.0
        %v2805 = vadd.f32 %v2746, 1.0
        %v2806 = vadd.f32 %v2748, 1.0
        %v2807 = vadd.f32 %v2750, 1.0
        %v2808 = vadd.f32 %v2752, 1.0
        %v2809 = vadd.f32 %v2754, 1.0
        %v2810 = vadd.f32 %v2756, 1.0
        %v2811 = vadd.f32 %v2758, 1.0
        %v2812 = vadd.f32 %v2760, 1.0
        %v2813 = vadd.f32 %v2762, 1.0
        %v2814 = vadd.f32 %v2764, 1.0
        %v2815 = vadd.f32 %v2766, 1.0
        %v2816 = vadd.f32 %v2768, 1.0
        %v2817 = vadd.f32 %v2770, 1.0
        %v2818 = vadd.f32 %v2772, 1.0
        %v2819 = vadd.f32 %v2774, 1.0
        %v2820 = vadd.f32 %v2776, 1.0
        %v2821 = vadd.f32 %v2778, 1.0
        %v2822 = vadd.f32 %v2780, 1.0
        %v2823 = vadd.f32 %v2782, 1.0
        %v2824 = vadd.f32 %v2784, 1.0
        %v2825 = vadd.f32 %v2786, 1.0
        %v2826 = vadd.f32 %v2788, 1.0
        %v2827 = vadd.f32 %v2790, 1.0
        %v2828 = vadd.f32 %v2792, 1.0
        %v2829 = vadd.f32 %v2794, 1.0
        %v2830 = vadd.f32 %v2796, 1.0
        %v2831 = vadd.f32 %v2798, 1.0
        %v2832 = vadd.f32 %v2800, 1.0
        %v2833 = vlog2.pop %v2801
        %v2834 = vmul.f32 %v2833, 0.6931472
        %v2835 = vlog2.pop %v2802
        %v2836 = vmul.f32 %v2835, 0.6931472
        %v2837 = vlog2.pop %v2803
        %v2838 = vmul.f32 %v2837, 0.6931472
        %v2839 = vlog2.pop %v2804
        %v2840 = vmul.f32 %v2839, 0.6931472
        %v2841 = vlog2.pop %v2805
        %v2842 = vmul.f32 %v2841, 0.6931472
        %v2843 = vlog2.pop %v2806
        %v2844 = vmul.f32 %v2843, 0.6931472
        %v2845 = vlog2.pop %v2807
        %v2846 = vmul.f32 %v2845, 0.6931472
        %v2847 = vlog2.pop %v2808
        %v2848 = vmul.f32 %v2847, 0.6931472
        %v2849 = vlog2.pop %v2809
        %v2850 = vmul.f32 %v2849, 0.6931472
        %v2851 = vlog2.pop %v2810
        %v2852 = vmul.f32 %v2851, 0.6931472
        %v2853 = vlog2.pop %v2811
        %v2854 = vmul.f32 %v2853, 0.6931472
        %v2855 = vlog2.pop %v2812
        %v2856 = vmul.f32 %v2855, 0.6931472
        %v2857 = vlog2.pop %v2813
        %v2858 = vmul.f32 %v2857, 0.6931472
        %v2859 = vlog2.pop %v2814
        %v2860 = vmul.f32 %v2859, 0.6931472
        %v2861 = vlog2.pop %v2815
        %v2862 = vmul.f32 %v2861, 0.6931472
        %v2863 = vlog2.pop %v2816
        %v2864 = vmul.f32 %v2863, 0.6931472
        %v2865 = vlog2.pop %v2817
        %v2866 = vmul.f32 %v2865, 0.6931472
        %v2867 = vlog2.pop %v2818
        %v2868 = vmul.f32 %v2867, 0.6931472
        %v2869 = vlog2.pop %v2819
        %v2870 = vmul.f32 %v2869, 0.6931472
        %v2871 = vlog2.pop %v2820
        %v2872 = vmul.f32 %v2871, 0.6931472
        %v2873 = vlog2.pop %v2821
        %v2874 = vmul.f32 %v2873, 0.6931472
        %v2875 = vlog2.pop %v2822
        %v2876 = vmul.f32 %v2875, 0.6931472
        %v2877 = vlog2.pop %v2823
        %v2878 = vmul.f32 %v2877, 0.6931472
        %v2879 = vlog2.pop %v2824
        %v2880 = vmul.f32 %v2879, 0.6931472
        %v2881 = vlog2.pop %v2825
        %v2882 = vmul.f32 %v2881, 0.6931472
        %v2883 = vlog2.pop %v2826
        %v2884 = vmul.f32 %v2883, 0.6931472
        %v2885 = vlog2.pop %v2827
        %v2886 = vmul.f32 %v2885, 0.6931472
        %v2887 = vlog2.pop %v2828
        %v2888 = vmul.f32 %v2887, 0.6931472
        %v2889 = vlog2.pop %v2829
        %v2890 = vmul.f32 %v2889, 0.6931472
        %v2891 = vlog2.pop %v2830
        %v2892 = vmul.f32 %v2891, 0.6931472
        %v2893 = vlog2.pop %v2831
        %v2894 = vmul.f32 %v2893, 0.6931472
        %v2895 = vlog2.pop %v2832
        %v2896 = vmul.f32 %v2895, 0.6931472
        %v2897 = vsub.f32 %v2641, %v2834
        %v2898 = vsub.f32 %v2642, %v2836
        %v2899 = vsub.f32 %v2643, %v2838
        %v2900 = vsub.f32 %v2644, %v2840
        %v2901 = vsub.f32 %v2645, %v2842
        %v2902 = vsub.f32 %v2646, %v2844
        %v2903 = vsub.f32 %v2647, %v2846
        %v2904 = vsub.f32 %v2648, %v2848
        %v2905 = vsub.f32 %v2649, %v2850
        %v2906 = vsub.f32 %v2650, %v2852
        %v2907 = vsub.f32 %v2651, %v2854
        %v2908 = vsub.f32 %v2652, %v2856
        %v2909 = vsub.f32 %v2653, %v2858
        %v2910 = vsub.f32 %v2654, %v2860
        %v2911 = vsub.f32 %v2655, %v2862
        %v2912 = vsub.f32 %v2656, %v2864
        %v2913 = vsub.f32 %v2657, %v2866
        %v2914 = vsub.f32 %v2658, %v2868
        %v2915 = vsub.f32 %v2659, %v2870
        %v2916 = vsub.f32 %v2660, %v2872
        %v2917 = vsub.f32 %v2661, %v2874
        %v2918 = vsub.f32 %v2662, %v2876
        %v2919 = vsub.f32 %v2663, %v2878
        %v2920 = vsub.f32 %v2664, %v2880
        %v2921 = vsub.f32 %v2665, %v2882
        %v2922 = vsub.f32 %v2666, %v2884
        %v2923 = vsub.f32 %v2667, %v2886
        %v2924 = vsub.f32 %v2668, %v2888
        %v2925 = vsub.f32 %v2669, %v2890
        %v2926 = vsub.f32 %v2670, %v2892
        %v2927 = vsub.f32 %v2671, %v2894
        %v2928 = vsub.f32 %v2672, %v2896
        %vm2929 = vcmask 7168
        %2930 = vst.msk [vmem:[%s391] sm:$0xff] %vm2929, %v2897
        %2931 = vst.msk [vmem:[%s391 + $0x8] sm:$0xff] %vm2929, %v2898
        %2932 = vst.msk [vmem:[%s391 + $0x10] sm:$0xff] %vm2929, %v2899
        %2933 = vst.msk [vmem:[%s391 + $0x18] sm:$0xff] %vm2929, %v2900
        %2934 = vst.msk [vmem:[%s391 + $0x20] sm:$0xff] %vm2929, %v2901
        %2935 = vst.msk [vmem:[%s391 + $0x28] sm:$0xff] %vm2929, %v2902
        %2936 = vst.msk [vmem:[%s391 + $0x30] sm:$0xff] %vm2929, %v2903
        %2937 = vst.msk [vmem:[%s391 + $0x38] sm:$0xff] %vm2929, %v2904
        %2938 = vst.msk [vmem:[%s391 + $0x40] sm:$0xff] %vm2929, %v2905
        %2939 = vst.msk [vmem:[%s391 + $0x48] sm:$0xff] %vm2929, %v2906
        %2940 = vst.msk [vmem:[%s391 + $0x50] sm:$0xff] %vm2929, %v2907
        %2941 = vst.msk [vmem:[%s391 + $0x58] sm:$0xff] %vm2929, %v2908
        %2942 = vst.msk [vmem:[%s391 + $0x60] sm:$0xff] %vm2929, %v2909
        %2943 = vst.msk [vmem:[%s391 + $0x68] sm:$0xff] %vm2929, %v2910
        %2944 = vst.msk [vmem:[%s391 + $0x70] sm:$0xff] %vm2929, %v2911
        %2945 = vst.msk [vmem:[%s391 + $0x78] sm:$0xff] %vm2929, %v2912
        %2946 = vst.msk [vmem:[%s391 + $0x80] sm:$0xff] %vm2929, %v2913
        %2947 = vst.msk [vmem:[%s391 + $0x88] sm:$0xff] %vm2929, %v2914
        %2948 = vst.msk [vmem:[%s391 + $0x90] sm:$0xff] %vm2929, %v2915
        %2949 = vst.msk [vmem:[%s391 + $0x98] sm:$0xff] %vm2929, %v2916
        %2950 = vst.msk [vmem:[%s391 + $0xa0] sm:$0xff] %vm2929, %v2917
        %2951 = vst.msk [vmem:[%s391 + $0xa8] sm:$0xff] %vm2929, %v2918
        %2952 = vst.msk [vmem:[%s391 + $0xb0] sm:$0xff] %vm2929, %v2919
        %2953 = vst.msk [vmem:[%s391 + $0xb8] sm:$0xff] %vm2929, %v2920
        %2954 = vst.msk [vmem:[%s391 + $0xc0] sm:$0xff] %vm2929, %v2921
        %2955 = vst.msk [vmem:[%s391 + $0xc8] sm:$0xff] %vm2929, %v2922
        %2956 = vst.msk [vmem:[%s391 + $0xd0] sm:$0xff] %vm2929, %v2923
        %2957 = vst.msk [vmem:[%s391 + $0xd8] sm:$0xff] %vm2929, %v2924
        %2958 = vst.msk [vmem:[%s391 + $0xe0] sm:$0xff] %vm2929, %v2925
        %2959 = vst.msk [vmem:[%s391 + $0xe8] sm:$0xff] %vm2929, %v2926
        %2960 = vst.msk [vmem:[%s391 + $0xf0] sm:$0xff] %vm2929, %v2927
        %2961 = vst.msk [vmem:[%s391 + $0xf8] sm:$0xff] %vm2929, %v2928
        %p2962 = scmp.lt.s32.totalorder %s26, 1
        %s2963 = scalar_select %p2962, %s26, 1
        %s2964 = smul.addr %s2963, 32
        %s2965 = smul.addr %s2964, 8
        %s2966 = scalar_lea.vmem %s9, %s2965
        %s2967 = sand.u32 %s259, 1
        %s2968 = scalar_lea.sflag [#allocation4], %s2967
        %s2969 = sand.u32 %s259, 1
        %s2970 = smul.addr %s2969, 512
        %s2971 = scalar_lea.vmem [#allocation3], %s2970
        // Predicated region
        $region57: #{tpu_custom_call.1} parent=55 // pred_check
          %p2972 = pneg %p243
        $region58: #{tpu_custom_call.1} parent=55 // pred_check_branch
          %2974 = sbr.rel (%p2972) target = $region60
        $region59: #{tpu_custom_call.1} parent=55 // pred_region
          _
        $region60: #{tpu_custom_call.1} parent=55 // pred_fallthru
          _
        // Predicated region
        $region61: #{tpu_custom_call.1} parent=55 // pred_check
          %p2975 = pneg %p269
        $region62: #{tpu_custom_call.1} parent=55 // pred_check_branch
          %2977 = sbr.rel (%p2975) target = $region64
        $region63: #{tpu_custom_call.1} parent=55 // pred_region
          %s2979 = ssub.s32 8192, 8192
          %2980 = vsyncadd %s2968, %s2979
          %s2981 = smul.addr %s26, 64
          %s2982 = smul.addr %s2981, 128
          %s2983 = scalar_lea.hbm %s10, %s2982
          %s2984 = sshll.u32 %s2971, 4
          %s2985 = int_to_ptr.vmem [resolvable:$true] %s2984
          %2990 = dma.vmem_to_hbm [thread:$0]  %s2985, 8192, %s2983, %s2968, 256, 256, 16
        $region64: #{tpu_custom_call.1} parent=55 // pred_fallthru
          _
      $region56: #{tpu_custom_call.1} parent=5 // pred_fallthru
        _
      %p2991 = scmp.le.s32.totalorder 2, %s21
      // Predicated region
      $region65: #{tpu_custom_call.1} parent=5 // pred_check
        %p2992 = pneg %p2991
      $region66: #{tpu_custom_call.1} parent=5 // pred_check_branch
        %2994 = sbr.rel (%p2992) target = $region68
      $region67: #{tpu_custom_call.1} parent=5 // pred_region
        %s2995 = ssub.s32 %s21, 2
        // Predicated region
        $region69: #{tpu_custom_call.1} parent=67 // pred_check
          %p2996 = pneg %p249
        $region70: #{tpu_custom_call.1} parent=67 // pred_check_branch
          %2998 = sbr.rel (%p2996) target = $region72
        $region71: #{tpu_custom_call.1} parent=67 // pred_region
          %p2999 = scmp.lt.s32.totalorder %s27, 1
          %s3000 = scalar_select %p2999, %s27, 1
          %s3001 = smul.addr %s3000, 32
          %s3002 = smul.addr %s3001, 8
          %s3003 = scalar_lea.vmem %s9, %s3002
        $region72: #{tpu_custom_call.1} parent=67 // pred_fallthru
          _
        // Predicated region
        $region73: #{tpu_custom_call.1} parent=67 // pred_check
          %p3004 = pneg %p275
        $region74: #{tpu_custom_call.1} parent=67 // pred_check_branch
          %3006 = sbr.rel (%p3004) target = $region76
        $region75: #{tpu_custom_call.1} parent=67 // pred_region
          %s3007 = sand.u32 %s260, 1
          %s3008 = scalar_lea.sflag [#allocation4], %s3007
          %s3009 = sand.u32 %s260, 1
          %s3010 = smul.addr %s3009, 512
          %s3011 = scalar_lea.vmem [#allocation3], %s3010
          %3012 = dma.done %s3008, 8192
        $region76: #{tpu_custom_call.1} parent=67 // pred_fallthru
          _
      $region68: #{tpu_custom_call.1} parent=5 // pred_fallthru
        _
    $region6: #{tpu_custom_call.1} parent=1 // loop_footer
      %s25 = sadd.s32 1, %s21
    $region7: #{tpu_custom_call.1} parent=1 // loop_footer_branch
      %20 = sbr.rel target = $region3
    $region8: #{tpu_custom_call.1} parent=1 // loop_exit
      _
    %3013 = vsyncpa [#allocation4], 1
    %s3014 = scalar_lea.sflag [#allocation4], 1
    %3015 = vsyncpa %s3014, 1

</llo_original>
